<compile_context>
chip_gen: v7x
topology: tpu7x:2x2x1
jax: 0.10.0
libtpu: 0.0.40
codegen_flags: <defaults>
</compile_context>

<pallas_src>
import math
from functools import partial

import jax
import jax.numpy as jnp
from jax.experimental import pallas as pl
from jax.experimental.pallas import tpu as pltpu

EPS = 1e-5
_VMEM = pl.BlockSpec(memory_space=pltpu.MemorySpace.VMEM)


# ----------------------------- fused Pallas kernel ---------------------------

def _make_block_kernel(*, N, H1, lanes, rows1, rows2, pad2_row, pad2_lane,
                       identity_from_input, count):
    """Builds the fused ResNetBlock kernel.

    Activation layout inside the kernel: per batch element a 2-D tile with
    rows = output height (1 for the Conv1d path) and lanes = (width, channels)
    flattened.  `rows1`/`rows2` are the static row offsets of the k row-slab
    matmuls for conv_A / conv_B (all width taps are folded into the weights).
    """

    def kernel(*refs):
        if identity_from_input:
            (xin_ref, xid_ref, w1_ref, w2_ref, cred_ref, cbr_ref,
             gA_ref, bA_ref, gB_ref, bB_ref, o_ref, tpad_ref) = refs
        else:
            (xin_ref, w1_ref, w2_ref, cred_ref, cbr_ref,
             gA_ref, bA_ref, gB_ref, bB_ref, o_ref, tpad_ref) = refs
            xid_ref = None

        cred = cred_ref[...]          # (lanes, Cout): reduce (w, c) lanes -> c
        cbr = cbr_ref[...]            # (Cout, lanes): broadcast c -> (w, c)
        w1 = [w1_ref[i] for i in range(len(rows1))]
        w2 = [w2_ref[i] for i in range(len(rows2))]

        def bn_coeffs(s, q, g, b):
            # PyTorch training-mode BN: batch statistics, biased variance.
            mean = jnp.dot(s, cred) / count
            var = jnp.maximum(jnp.dot(q, cred) / count - mean * mean, 0.0)
            scale = g * jax.lax.rsqrt(var + EPS)
            shift = b - mean * scale
            # broadcast per-channel coeffs back to the (w, c)-tiled lane layout
            return jnp.dot(scale, cbr), jnp.dot(shift, cbr)

        # ---- phase 1: conv_A as k row-slab MXU matmuls per batch element,
        #               accumulating BN sum / sum-of-squares on the fly.
        y1 = []
        s1 = jnp.zeros((1, lanes), jnp.float32)
        q1 = jnp.zeros((1, lanes), jnp.float32)
        for n in range(N):
            acc = jnp.zeros((H1, lanes), jnp.float32)
            for i, ro in enumerate(rows1):
                acc = acc + jnp.dot(xin_ref[n, pl.ds(ro, H1), :], w1[i],
                                    preferred_element_type=jnp.float32)
            y1.append(acc)
            s1 = s1 + jnp.sum(acc, axis=0, keepdims=True)
            q1 = q1 + jnp.sum(acc * acc, axis=0, keepdims=True)

        scale1, shift1 = bn_coeffs(s1, q1, gA_ref[...], bA_ref[...])

        # ---- phase 2: BN_A (+ReLU) written into a zero-padded VMEM scratch,
        #               so conv_B never touches HBM.
        tpad_ref[...] = jnp.zeros_like(tpad_ref)
        t_pre = []
        for n in range(N):
            t_n = y1[n] * scale1 + shift1          # pre-ReLU (identity branch)
            t_pre.append(t_n)
            tpad_ref[n, pl.ds(pad2_row, H1), pl.ds(pad2_lane, lanes)] = (
                jnp.maximum(t_n, 0.0))

        # ---- phase 3: conv_B from the VMEM-resident padded intermediate.
        y2 = []
        s2 = jnp.zeros((1, lanes), jnp.float32)
        q2 = jnp.zeros((1, lanes), jnp.float32)
        for n in range(N):
            acc = jnp.zeros((H1, lanes), jnp.float32)
            for i, ro in enumerate(rows2):
                acc = acc + jnp.dot(tpad_ref[n, pl.ds(ro, H1), :], w2[i],
                                    preferred_element_type=jnp.float32)
            y2.append(acc)
            s2 = s2 + jnp.sum(acc, axis=0, keepdims=True)
            q2 = q2 + jnp.sum(acc * acc, axis=0, keepdims=True)

        scale2, shift2 = bn_coeffs(s2, q2, gB_ref[...], bB_ref[...])

        # ---- phase 4: BN_B + residual identity + final ReLU.
        for n in range(N):
            idn = xid_ref[n] if identity_from_input else t_pre[n]
            o_ref[n] = jnp.maximum(y2[n] * scale2 + shift2 + idn, 0.0)

    return kernel


# ---------------------- weight preprocessing (wrapper side) ------------------

def _row_conv_mats(w, w_in_pad, w_out, dilation):
    """Block-banded per-kh weight matrices for the in-kernel row-slab matmuls.

    w: (Cout, Cin, kH, kW).  Returns (kH, w_in_pad*Cin, w_out*Cout) mapping a
    full padded row slab (lanes = (w_in, cin)) to one conv output row
    (lanes = (w_out, cout)), with every kW tap folded in (stride 1).
    """
    Cout, Cin, kH, kW = w.shape
    wi = jnp.arange(w_in_pad)
    wo = jnp.arange(w_out)
    mats = []
    for kh in range(kH):
        m = jnp.zeros((w_in_pad * Cin, w_out * Cout), jnp.float32)
        for kw in range(kW):
            sel = (wi[:, None] == wo[None, :] + kw * dilation).astype(jnp.float32)
            m = m + jnp.kron(sel, w[:, :, kh, kw].T)
        mats.append(m)
    return jnp.stack(mats)


def _channel_reduce_mats(Cout, width):
    cred = jnp.tile(jnp.eye(Cout, dtype=jnp.float32), (width, 1))  # (width*Cout, Cout)
    return cred, cred.T


# ------------------------------- forward wrappers ----------------------------

def _forward_2d(bp, x, *, kernel_size, stride, padding, dilation):
    wA, gA, bA = bp["wA"], bp["gA"], bp["bA"]
    wB, gB, bB = bp["wB"], bp["gB"], bp["bB"]
    N, Cin, H, W = x.shape
    Cout = wA.shape[0]
    k, s, p, d = kernel_size, stride, padding, dilation
    if s != 1:
        raise NotImplementedError("fused kernel only implements stride=1")  # TODO(synk)
    H1 = H + 2 * p - d * (k - 1)
    W1 = W + 2 * p - d * (k - 1)
    p2 = k - 1                     # conv_B: stride 1, padding k-1, dilation 2
    Wp1, Wp2 = W + 2 * p, W1 + 2 * p2
    lanes = W1 * Cout

    # one-time boundary layout change: NCHW -> rows=(n,h), lanes=(w,c), padded
    xin = jnp.transpose(x, (0, 2, 3, 1))
    xin = jnp.pad(xin, ((0, 0), (p, p), (p, p), (0, 0)))
    xin = xin.reshape(N, H + 2 * p, Wp1 * Cin)

    wrow1 = _row_conv_mats(wA, Wp1, W1, d)       # (k, Wp1*Cin, lanes)
    wrow2 = _row_conv_mats(wB, Wp2, W1, 2)       # (k, Wp2*Cout, lanes)
    cred, cbr = _channel_reduce_mats(Cout, W1)

    identity_from_input = ((N, Cout, H1, W1) == x.shape)
    kern = _make_block_kernel(
        N=N, H1=H1, lanes=lanes,
        rows1=[kh * d for kh in range(k)],
        rows2=[kh * 2 for kh in range(k)],
        pad2_row=p2, pad2_lane=p2 * Cout,
        identity_from_input=identity_from_input,
        count=float(N * H1 * W1))

    inputs = [xin]
    if identity_from_input:
        inputs.append(jnp.transpose(x, (0, 2, 3, 1)).reshape(N, H, W * Cin))
    inputs += [wrow1, wrow2, cred, cbr,
               gA.reshape(1, -1), bA.reshape(1, -1),
               gB.reshape(1, -1), bB.reshape(1, -1)]

    out = pl.pallas_call(
        kern,
        out_shape=jax.ShapeDtypeStruct((N, H1, lanes), jnp.float32),
        in_specs=[_VMEM] * len(inputs),
        out_specs=_VMEM,
        scratch_shapes=[pltpu.VMEM((N, H1 + 2 * p2, Wp2 * Cout), jnp.float32)],
    )(*inputs)
    return jnp.transpose(out.reshape(N, H1, W1, Cout), (0, 3, 1, 2))


def _forward_1d(bp, x, *, kernel_size, stride, padding, dilation):
    wA, gA, bA = bp["wA"], bp["gA"], bp["bA"]
    wB, gB, bB = bp["wB"], bp["gB"], bp["bB"]
    N, Cin, L = x.shape
    Cout = wA.shape[0]
    k, s, p, d = kernel_size, stride, padding, dilation
    if s != 1:
        raise NotImplementedError("fused kernel only implements stride=1")  # TODO(synk)
    L1 = L + 2 * p - d * (k - 1)
    p2 = k - 1
    Lp1, Lp2 = L + 2 * p, L1 + 2 * p2
    lanes = L1 * Cout

    xin = jnp.transpose(x, (0, 2, 1))
    xin = jnp.pad(xin, ((0, 0), (p, p), (0, 0))).reshape(N, 1, Lp1 * Cin)

    wrow1 = _row_conv_mats(wA[:, :, None, :], Lp1, L1, d)   # (1, Lp1*Cin, lanes)
    wrow2 = _row_conv_mats(wB[:, :, None, :], Lp2, L1, 2)   # (1, Lp2*Cout, lanes)
    cred, cbr = _channel_reduce_mats(Cout, L1)

    identity_from_input = ((N, Cout, L1) == x.shape)
    kern = _make_block_kernel(
        N=N, H1=1, lanes=lanes, rows1=[0], rows2=[0],
        pad2_row=0, pad2_lane=p2 * Cout,
        identity_from_input=identity_from_input,
        count=float(N * L1))

    inputs = [xin]
    if identity_from_input:
        inputs.append(jnp.transpose(x, (0, 2, 1)).reshape(N, 1, L * Cin))
    inputs += [wrow1, wrow2, cred, cbr,
               gA.reshape(1, -1), bA.reshape(1, -1),
               gB.reshape(1, -1), bB.reshape(1, -1)]

    out = pl.pallas_call(
        kern,
        out_shape=jax.ShapeDtypeStruct((N, 1, lanes), jnp.float32),
        in_specs=[_VMEM] * len(inputs),
        out_specs=_VMEM,
        scratch_shapes=[pltpu.VMEM((N, 1, Lp2 * Cout), jnp.float32)],
    )(*inputs)
    return jnp.transpose(out.reshape(N, L1, Cout), (0, 2, 1))


def resnet_block_forward(params, x, *, kernel_size=3, stride=1, padding=0, dilation=1):
    """Pallas forward of ResNetBlock (training-mode BatchNorm, as in the spec)."""
    if x.ndim == 3:
        bp = {"wA": params["w11"], "gA": params["g11"], "bA": params["b11"],
              "wB": params["w12"], "gB": params["g12"], "bB": params["b12"]}
        return _forward_1d(bp, x, kernel_size=kernel_size, stride=stride,
                           padding=padding, dilation=dilation)
    bp = {"wA": params["w21"], "gA": params["g21"], "bA": params["b21"],
          "wB": params["w22"], "gB": params["g22"], "bB": params["b22"]}
    return _forward_2d(bp, x, kernel_size=kernel_size, stride=stride,
                       padding=padding, dilation=dilation)


# ------------------------------ parameters -----------------------------------

def init_params(key, in_channels, out_channels, kernel_size):
    """Parameters mirroring ResNetBlock.  Conv biases are omitted: training-mode
    BatchNorm immediately after every conv cancels them exactly."""
    k = kernel_size
    ks = jax.random.split(key, 12)

    def w(kk, shape, fan_in):
        return jax.random.normal(kk, shape, jnp.float32) / math.sqrt(fan_in)

    def bn(kg, kb):
        return (1.0 + 0.1 * jax.random.normal(kg, (out_channels,), jnp.float32),
                0.1 * jax.random.normal(kb, (out_channels,), jnp.float32))

    g21, b21 = bn(ks[4], ks[5])
    g22, b22 = bn(ks[6], ks[7])
    g11, b11 = bn(ks[8], ks[9])
    g12, b12 = bn(ks[10], ks[11])
    return {
        "w21": w(ks[0], (out_channels, in_channels, k, k), in_channels * k * k),
        "w22": w(ks[1], (out_channels, out_channels, k, k), out_channels * k * k),
        "w11": w(ks[2], (out_channels, in_channels, k), in_channels * k),
        "w12": w(ks[3], (out_channels, out_channels, k), out_channels * k),
        "g21": g21, "b21": b21, "g22": g22, "b22": b22,
        "g11": g11, "b11": b11, "g12": g12, "b12": b12,
    }


# ---------------------------- pure-JAX reference -----------------------------

def _bn_train(y, gamma, beta):
    mean = jnp.mean(y, axis=(0, 2, 3), keepdims=True)
    var = jnp.mean(jnp.square(y - mean), axis=(0, 2, 3), keepdims=True)
    return ((y - mean) * jax.lax.rsqrt(var + EPS)
            * gamma.reshape(1, -1, 1, 1) + beta.reshape(1, -1, 1, 1))


def reference_forward(params, x, *, kernel_size, stride, padding, dilation):
    """Pure-JAX replica of ResNetBlock.forward (training-mode BN)."""
    k = kernel_size
    if x.ndim == 3:
        wA, gA, bA = params["w11"], params["g11"], params["b11"]
        wB, gB, bB = params["w12"], params["g12"], params["b12"]
        x4, wA4, wB4 = x[..., None], wA[..., None], wB[..., None]
        sA, pA, dA = (stride, 1), ((padding, padding), (0, 0)), (dilation, 1)
        sB, pB, dB = (1, 1), ((k - 1, k - 1), (0, 0)), (2, 1)
    else:
        wA, gA, bA = params["w21"], params["g21"], params["b21"]
        wB, gB, bB = params["w22"], params["g22"], params["b22"]
        x4, wA4, wB4 = x, wA, wB
        sA, pA, dA = (stride, stride), ((padding, padding),) * 2, (dilation, dilation)
        sB, pB, dB = (1, 1), ((k - 1, k - 1),) * 2, (2, 2)

    def conv(inp, w_, strides, pads, dils):
        return jax.lax.conv_general_dilated(
            inp, w_, window_strides=strides, padding=pads, rhs_dilation=dils,
            dimension_numbers=("NCHW", "OIHW", "NCHW"),
            precision=jax.lax.Precision.HIGHEST)

    t = _bn_train(conv(x4, wA4, sA, pA, dA), gA, bA)
    out = _bn_train(conv(jnp.maximum(t, 0.0), wB4, sB, pB, dB), gB, bB)
    identity = x4 if out.shape == x4.shape else t
    out = jnp.maximum(out + identity, 0.0)
    return out[..., 0] if x.ndim == 3 else out


# ----------------------------------- main -------------------------------------

if __name__ == "__main__":
    root = jax.random.PRNGKey(0)
    k_x2, k_x2b, k_x1, k_p1, k_p2, k_p3 = jax.random.split(root, 6)
    checks = []

    # 2-D path, channel count changes -> identity goes through conv21 + bn21.
    k_sz, pad = 3, 1
    params_a = init_params(k_p1, 4, 8, k_sz)
    x_a = jax.random.normal(k_x2, (2, 4, 16, 16), jnp.float32)
    fwd_a = jax.jit(partial(resnet_block_forward, kernel_size=k_sz, stride=1,
                            padding=pad, dilation=1))
    out_a = jax.block_until_ready(fwd_a(params_a, x_a))
    ref_a = reference_forward(params_a, x_a, kernel_size=k_sz, stride=1,
                              padding=pad, dilation=1)
    checks.append((out_a, ref_a, (2, 8, 16, 16)))

    # 2-D path, shapes match -> identity is the raw input.
    params_b = init_params(k_p2, 8, 8, k_sz)
    x_b = jax.random.normal(k_x2b, (2, 8, 16, 16), jnp.float32)
    fwd_b = jax.jit(partial(resnet_block_forward, kernel_size=k_sz, stride=1,
                            padding=pad, dilation=1))
    out_b = jax.block_until_ready(fwd_b(params_b, x_b))
    ref_b = reference_forward(params_b, x_b, kernel_size=k_sz, stride=1,
                              padding=pad, dilation=1)
    checks.append((out_b, ref_b, (2, 8, 16, 16)))

    # 1-D path (Conv1d / BatchNorm1d branch of the module).
    params_c = init_params(k_p3, 4, 8, k_sz)
    x_c = jax.random.normal(k_x1, (2, 4, 32), jnp.float32)
    fwd_c = jax.jit(partial(resnet_block_forward, kernel_size=k_sz, stride=1,
                            padding=0, dilation=1))
    out_c = jax.block_until_ready(fwd_c(params_c, x_c))
    ref_c = reference_forward(params_c, x_c, kernel_size=k_sz, stride=1,
                              padding=0, dilation=1)
    checks.append((out_c, ref_c, (2, 8, 30)))

    for out_i, ref_i, shape_i in checks:
        assert out_i.shape == shape_i, (out_i.shape, shape_i)
        assert bool(jnp.all(jnp.isfinite(out_i)))
        err = float(jnp.max(jnp.abs(out_i - ref_i)))
        assert err < 5e-2, err

    print("KERNEL_OK")
</pallas_src>

<mosaic_0001>
module attributes {stable_mosaic.version = 11 : i64} {
  func.func @kernel(%arg0: memref<2x18x72xf32, #tpu.memory_space<vmem>>, %arg1: memref<3x72x128xf32, #tpu.memory_space<vmem>>, %arg2: memref<3x160x128xf32, #tpu.memory_space<vmem>>, %arg3: memref<128x8xf32, #tpu.memory_space<vmem>>, %arg4: memref<8x128xf32, #tpu.memory_space<vmem>>, %arg5: memref<1x8xf32, #tpu.memory_space<vmem>>, %arg6: memref<1x8xf32, #tpu.memory_space<vmem>>, %arg7: memref<1x8xf32, #tpu.memory_space<vmem>>, %arg8: memref<1x8xf32, #tpu.memory_space<vmem>>, %arg9: memref<2x16x128xf32, #tpu.memory_space<vmem>>, %arg10: memref<2x20x160xf32, #tpu.memory_space<vmem>>) attributes {dimension_semantics = [], scalar_prefetch = 0 : i64, scratch_operands = 1 : i64, tpu.core_type = #tpu.core_type<tc>} {
    %c0 = arith.constant 0 : index
    %c0_0 = arith.constant 0 : index
    %0 = vector.load %arg3[%c0, %c0_0] : memref<128x8xf32, #tpu.memory_space<vmem>>, vector<128x8xf32>
    %c0_1 = arith.constant 0 : index
    %c0_2 = arith.constant 0 : index
    %1 = vector.load %arg4[%c0_1, %c0_2] : memref<8x128xf32, #tpu.memory_space<vmem>>, vector<8x128xf32>
    %c0_3 = arith.constant 0 : index
    %c0_4 = arith.constant 0 : index
    %c0_5 = arith.constant 0 : index
    %2 = vector.load %arg1[%c0_3, %c0_4, %c0_5] : memref<3x72x128xf32, #tpu.memory_space<vmem>>, vector<1x72x128xf32>
    %3 = vector.shape_cast %2 : vector<1x72x128xf32> to vector<72x128xf32>
    %c1 = arith.constant 1 : index
    %c0_6 = arith.constant 0 : index
    %c0_7 = arith.constant 0 : index
    %4 = vector.load %arg1[%c1, %c0_6, %c0_7] : memref<3x72x128xf32, #tpu.memory_space<vmem>>, vector<1x72x128xf32>
    %5 = vector.shape_cast %4 : vector<1x72x128xf32> to vector<72x128xf32>
    %c2 = arith.constant 2 : index
    %c0_8 = arith.constant 0 : index
    %c0_9 = arith.constant 0 : index
    %6 = vector.load %arg1[%c2, %c0_8, %c0_9] : memref<3x72x128xf32, #tpu.memory_space<vmem>>, vector<1x72x128xf32>
    %7 = vector.shape_cast %6 : vector<1x72x128xf32> to vector<72x128xf32>
    %c0_10 = arith.constant 0 : index
    %c0_11 = arith.constant 0 : index
    %c0_12 = arith.constant 0 : index
    %8 = vector.load %arg2[%c0_10, %c0_11, %c0_12] : memref<3x160x128xf32, #tpu.memory_space<vmem>>, vector<1x160x128xf32>
    %9 = vector.shape_cast %8 : vector<1x160x128xf32> to vector<160x128xf32>
    %c1_13 = arith.constant 1 : index
    %c0_14 = arith.constant 0 : index
    %c0_15 = arith.constant 0 : index
    %10 = vector.load %arg2[%c1_13, %c0_14, %c0_15] : memref<3x160x128xf32, #tpu.memory_space<vmem>>, vector<1x160x128xf32>
    %11 = vector.shape_cast %10 : vector<1x160x128xf32> to vector<160x128xf32>
    %c2_16 = arith.constant 2 : index
    %c0_17 = arith.constant 0 : index
    %c0_18 = arith.constant 0 : index
    %12 = vector.load %arg2[%c2_16, %c0_17, %c0_18] : memref<3x160x128xf32, #tpu.memory_space<vmem>>, vector<1x160x128xf32>
    %13 = vector.shape_cast %12 : vector<1x160x128xf32> to vector<160x128xf32>
    %cst = arith.constant 0.000000e+00 : f32
    %14 = vector.broadcast %cst : f32 to vector<1x128xf32>
    %cst_19 = arith.constant 0.000000e+00 : f32
    %15 = vector.broadcast %cst_19 : f32 to vector<1x128xf32>
    %cst_20 = arith.constant 0.000000e+00 : f32
    %16 = vector.broadcast %cst_20 : f32 to vector<16x128xf32>
    %c0_21 = arith.constant 0 : index
    %c0_22 = arith.constant 0 : index
    %c0_23 = arith.constant 0 : index
    %17 = vector.load %arg0[%c0_21, %c0_22, %c0_23] : memref<2x18x72xf32, #tpu.memory_space<vmem>>, vector<1x16x72xf32>
    %18 = vector.shape_cast %17 : vector<1x16x72xf32> to vector<16x72xf32>
    %cst_24 = arith.constant dense<0.000000e+00> : vector<16x128xf32>
    %19 = tpu.matmul %18, %3, %cst_24 {dimension_numbers = #tpu.dot_dimension_numbers<[1], [0], [0], [1], [0, 0, 1, 1], [], []>} : vector<16x72xf32>, vector<72x128xf32>, vector<16x128xf32> -> vector<16x128xf32>
    %20 = arith.addf %16, %19 : vector<16x128xf32>
    %c0_25 = arith.constant 0 : index
    %c1_26 = arith.constant 1 : index
    %c0_27 = arith.constant 0 : index
    %21 = vector.load %arg0[%c0_25, %c1_26, %c0_27] : memref<2x18x72xf32, #tpu.memory_space<vmem>>, vector<1x16x72xf32>
    %22 = vector.shape_cast %21 : vector<1x16x72xf32> to vector<16x72xf32>
    %cst_28 = arith.constant dense<0.000000e+00> : vector<16x128xf32>
    %23 = tpu.matmul %22, %5, %cst_28 {dimension_numbers = #tpu.dot_dimension_numbers<[1], [0], [0], [1], [0, 0, 1, 1], [], []>} : vector<16x72xf32>, vector<72x128xf32>, vector<16x128xf32> -> vector<16x128xf32>
    %24 = arith.addf %20, %23 : vector<16x128xf32>
    %c0_29 = arith.constant 0 : index
    %c2_30 = arith.constant 2 : index
    %c0_31 = arith.constant 0 : index
    %25 = vector.load %arg0[%c0_29, %c2_30, %c0_31] : memref<2x18x72xf32, #tpu.memory_space<vmem>>, vector<1x16x72xf32>
    %26 = vector.shape_cast %25 : vector<1x16x72xf32> to vector<16x72xf32>
    %cst_32 = arith.constant dense<0.000000e+00> : vector<16x128xf32>
    %27 = tpu.matmul %26, %7, %cst_32 {dimension_numbers = #tpu.dot_dimension_numbers<[1], [0], [0], [1], [0, 0, 1, 1], [], []>} : vector<16x72xf32>, vector<72x128xf32>, vector<16x128xf32> -> vector<16x128xf32>
    %28 = arith.addf %24, %27 : vector<16x128xf32>
    %cst_33 = arith.constant dense<0.000000e+00> : vector<128xf32>
    %29 = vector.multi_reduction <add>, %28, %cst_33 [0] : vector<16x128xf32> to vector<128xf32>
    %30 = vector.shape_cast %29 : vector<128xf32> to vector<1x128xf32>
    %31 = arith.addf %14, %30 : vector<1x128xf32>
    %32 = arith.mulf %28, %28 : vector<16x128xf32>
    %cst_34 = arith.constant dense<0.000000e+00> : vector<128xf32>
    %33 = vector.multi_reduction <add>, %32, %cst_34 [0] : vector<16x128xf32> to vector<128xf32>
    %34 = vector.shape_cast %33 : vector<128xf32> to vector<1x128xf32>
    %35 = arith.addf %15, %34 : vector<1x128xf32>
    %cst_35 = arith.constant 0.000000e+00 : f32
    %36 = vector.broadcast %cst_35 : f32 to vector<16x128xf32>
    %c1_36 = arith.constant 1 : index
    %c0_37 = arith.constant 0 : index
    %c0_38 = arith.constant 0 : index
    %37 = vector.load %arg0[%c1_36, %c0_37, %c0_38] : memref<2x18x72xf32, #tpu.memory_space<vmem>>, vector<1x16x72xf32>
    %38 = vector.shape_cast %37 : vector<1x16x72xf32> to vector<16x72xf32>
    %cst_39 = arith.constant dense<0.000000e+00> : vector<16x128xf32>
    %39 = tpu.matmul %38, %3, %cst_39 {dimension_numbers = #tpu.dot_dimension_numbers<[1], [0], [0], [1], [0, 0, 1, 1], [], []>} : vector<16x72xf32>, vector<72x128xf32>, vector<16x128xf32> -> vector<16x128xf32>
    %40 = arith.addf %36, %39 : vector<16x128xf32>
    %c1_40 = arith.constant 1 : index
    %c1_41 = arith.constant 1 : index
    %c0_42 = arith.constant 0 : index
    %41 = vector.load %arg0[%c1_40, %c1_41, %c0_42] : memref<2x18x72xf32, #tpu.memory_space<vmem>>, vector<1x16x72xf32>
    %42 = vector.shape_cast %41 : vector<1x16x72xf32> to vector<16x72xf32>
    %cst_43 = arith.constant dense<0.000000e+00> : vector<16x128xf32>
    %43 = tpu.matmul %42, %5, %cst_43 {dimension_numbers = #tpu.dot_dimension_numbers<[1], [0], [0], [1], [0, 0, 1, 1], [], []>} : vector<16x72xf32>, vector<72x128xf32>, vector<16x128xf32> -> vector<16x128xf32>
    %44 = arith.addf %40, %43 : vector<16x128xf32>
    %c1_44 = arith.constant 1 : index
    %c2_45 = arith.constant 2 : index
    %c0_46 = arith.constant 0 : index
    %45 = vector.load %arg0[%c1_44, %c2_45, %c0_46] : memref<2x18x72xf32, #tpu.memory_space<vmem>>, vector<1x16x72xf32>
    %46 = vector.shape_cast %45 : vector<1x16x72xf32> to vector<16x72xf32>
    %cst_47 = arith.constant dense<0.000000e+00> : vector<16x128xf32>
    %47 = tpu.matmul %46, %7, %cst_47 {dimension_numbers = #tpu.dot_dimension_numbers<[1], [0], [0], [1], [0, 0, 1, 1], [], []>} : vector<16x72xf32>, vector<72x128xf32>, vector<16x128xf32> -> vector<16x128xf32>
    %48 = arith.addf %44, %47 : vector<16x128xf32>
    %cst_48 = arith.constant dense<0.000000e+00> : vector<128xf32>
    %49 = vector.multi_reduction <add>, %48, %cst_48 [0] : vector<16x128xf32> to vector<128xf32>
    %50 = vector.shape_cast %49 : vector<128xf32> to vector<1x128xf32>
    %51 = arith.addf %31, %50 : vector<1x128xf32>
    %52 = arith.mulf %48, %48 : vector<16x128xf32>
    %cst_49 = arith.constant dense<0.000000e+00> : vector<128xf32>
    %53 = vector.multi_reduction <add>, %52, %cst_49 [0] : vector<16x128xf32> to vector<128xf32>
    %54 = vector.shape_cast %53 : vector<128xf32> to vector<1x128xf32>
    %55 = arith.addf %35, %54 : vector<1x128xf32>
    %c0_50 = arith.constant 0 : index
    %c0_51 = arith.constant 0 : index
    %56 = vector.load %arg5[%c0_50, %c0_51] : memref<1x8xf32, #tpu.memory_space<vmem>>, vector<1x8xf32>
    %c0_52 = arith.constant 0 : index
    %c0_53 = arith.constant 0 : index
    %57 = vector.load %arg6[%c0_52, %c0_53] : memref<1x8xf32, #tpu.memory_space<vmem>>, vector<1x8xf32>
    %cst_54 = arith.constant dense<0.000000e+00> : vector<1x8xf32>
    %58 = tpu.matmul %51, %0, %cst_54 {dimension_numbers = #tpu.dot_dimension_numbers<[1], [0], [0], [1], [0, 0, 1, 1], [], []>} : vector<1x128xf32>, vector<128x8xf32>, vector<1x8xf32> -> vector<1x8xf32>
    %cst_55 = arith.constant 5.120000e+02 : f32
    %59 = vector.broadcast %cst_55 : f32 to vector<1x8xf32>
    %60 = arith.divf %58, %59 : vector<1x8xf32>
    %cst_56 = arith.constant dense<0.000000e+00> : vector<1x8xf32>
    %61 = tpu.matmul %55, %0, %cst_56 {dimension_numbers = #tpu.dot_dimension_numbers<[1], [0], [0], [1], [0, 0, 1, 1], [], []>} : vector<1x128xf32>, vector<128x8xf32>, vector<1x8xf32> -> vector<1x8xf32>
    %cst_57 = arith.constant 5.120000e+02 : f32
    %62 = vector.broadcast %cst_57 : f32 to vector<1x8xf32>
    %63 = arith.divf %61, %62 : vector<1x8xf32>
    %64 = arith.mulf %60, %60 : vector<1x8xf32>
    %65 = arith.subf %63, %64 : vector<1x8xf32>
    %cst_58 = arith.constant 0.000000e+00 : f32
    %66 = vector.broadcast %cst_58 : f32 to vector<1x8xf32>
    %67 = arith.maximumf %65, %66 : vector<1x8xf32>
    %cst_59 = arith.constant 9.99999974E-6 : f32
    %68 = vector.broadcast %cst_59 : f32 to vector<1x8xf32>
    %69 = arith.addf %67, %68 : vector<1x8xf32>
    %70 = math.rsqrt %69 : vector<1x8xf32>
    %71 = arith.mulf %56, %70 : vector<1x8xf32>
    %72 = arith.mulf %60, %71 : vector<1x8xf32>
    %73 = arith.subf %57, %72 : vector<1x8xf32>
    %cst_60 = arith.constant dense<0.000000e+00> : vector<1x128xf32>
    %74 = tpu.matmul %71, %1, %cst_60 {dimension_numbers = #tpu.dot_dimension_numbers<[1], [0], [0], [1], [0, 0, 1, 1], [], []>} : vector<1x8xf32>, vector<8x128xf32>, vector<1x128xf32> -> vector<1x128xf32>
    %cst_61 = arith.constant dense<0.000000e+00> : vector<1x128xf32>
    %75 = tpu.matmul %73, %1, %cst_61 {dimension_numbers = #tpu.dot_dimension_numbers<[1], [0], [0], [1], [0, 0, 1, 1], [], []>} : vector<1x8xf32>, vector<8x128xf32>, vector<1x128xf32> -> vector<1x128xf32>
    %cst_62 = arith.constant 0.000000e+00 : f32
    %76 = vector.broadcast %cst_62 : f32 to vector<2x20x160xf32>
    %c0_63 = arith.constant 0 : index
    %c0_64 = arith.constant 0 : index
    %c0_65 = arith.constant 0 : index
    %77 = vector.load %arg10[%c0_63, %c0_64, %c0_65] : memref<2x20x160xf32, #tpu.memory_space<vmem>>, vector<2x20x160xf32>
    tpu.vector_store %arg10[%c0_63, %c0_64, %c0_65], %76 {strides = array<i32>} : memref<2x20x160xf32, #tpu.memory_space<vmem>>, vector<2x20x160xf32>,
    %78 = vector.broadcast %74 : vector<1x128xf32> to vector<16x128xf32>
    %79 = arith.mulf %28, %78 : vector<16x128xf32>
    %80 = vector.broadcast %75 : vector<1x128xf32> to vector<16x128xf32>
    %81 = arith.addf %79, %80 : vector<16x128xf32>
    %cst_66 = arith.constant 0.000000e+00 : f32
    %82 = vector.broadcast %cst_66 : f32 to vector<16x128xf32>
    %83 = arith.maximumf %81, %82 : vector<16x128xf32>
    %c0_67 = arith.constant 0 : index
    %c2_68 = arith.constant 2 : index
    %c16 = arith.constant 16 : index
    %84 = vector.load %arg10[%c0_67, %c2_68, %c16] : memref<2x20x160xf32, #tpu.memory_space<vmem>>, vector<1x16x128xf32>
    %85 = vector.shape_cast %84 : vector<1x16x128xf32> to vector<16x128xf32>
    %86 = vector.shape_cast %83 : vector<16x128xf32> to vector<1x16x128xf32>
    tpu.vector_store %arg10[%c0_67, %c2_68, %c16], %86 {strides = array<i32>} : memref<2x20x160xf32, #tpu.memory_space<vmem>>, vector<1x16x128xf32>,
    %87 = vector.broadcast %74 : vector<1x128xf32> to vector<16x128xf32>
    %88 = arith.mulf %48, %87 : vector<16x128xf32>
    %89 = vector.broadcast %75 : vector<1x128xf32> to vector<16x128xf32>
    %90 = arith.addf %88, %89 : vector<16x128xf32>
    %cst_69 = arith.constant 0.000000e+00 : f32
    %91 = vector.broadcast %cst_69 : f32 to vector<16x128xf32>
    %92 = arith.maximumf %90, %91 : vector<16x128xf32>
    %c1_70 = arith.constant 1 : index
    %c2_71 = arith.constant 2 : index
    %c16_72 = arith.constant 16 : index
    %93 = vector.load %arg10[%c1_70, %c2_71, %c16_72] : memref<2x20x160xf32, #tpu.memory_space<vmem>>, vector<1x16x128xf32>
    %94 = vector.shape_cast %93 : vector<1x16x128xf32> to vector<16x128xf32>
    %95 = vector.shape_cast %92 : vector<16x128xf32> to vector<1x16x128xf32>
    tpu.vector_store %arg10[%c1_70, %c2_71, %c16_72], %95 {strides = array<i32>} : memref<2x20x160xf32, #tpu.memory_space<vmem>>, vector<1x16x128xf32>,
    %cst_73 = arith.constant 0.000000e+00 : f32
    %96 = vector.broadcast %cst_73 : f32 to vector<1x128xf32>
    %cst_74 = arith.constant 0.000000e+00 : f32
    %97 = vector.broadcast %cst_74 : f32 to vector<1x128xf32>
    %cst_75 = arith.constant 0.000000e+00 : f32
    %98 = vector.broadcast %cst_75 : f32 to vector<16x128xf32>
    %c0_76 = arith.constant 0 : index
    %c0_77 = arith.constant 0 : index
    %c0_78 = arith.constant 0 : index
    %99 = vector.load %arg10[%c0_76, %c0_77, %c0_78] : memref<2x20x160xf32, #tpu.memory_space<vmem>>, vector<1x16x160xf32>
    %100 = vector.shape_cast %99 : vector<1x16x160xf32> to vector<16x160xf32>
    %cst_79 = arith.constant dense<0.000000e+00> : vector<16x128xf32>
    %101 = tpu.matmul %100, %9, %cst_79 {dimension_numbers = #tpu.dot_dimension_numbers<[1], [0], [0], [1], [0, 0, 1, 1], [], []>} : vector<16x160xf32>, vector<160x128xf32>, vector<16x128xf32> -> vector<16x128xf32>
    %102 = arith.addf %98, %101 : vector<16x128xf32>
    %c0_80 = arith.constant 0 : index
    %c2_81 = arith.constant 2 : index
    %c0_82 = arith.constant 0 : index
    %103 = vector.load %arg10[%c0_80, %c2_81, %c0_82] : memref<2x20x160xf32, #tpu.memory_space<vmem>>, vector<1x16x160xf32>
    %104 = vector.shape_cast %103 : vector<1x16x160xf32> to vector<16x160xf32>
    %cst_83 = arith.constant dense<0.000000e+00> : vector<16x128xf32>
    %105 = tpu.matmul %104, %11, %cst_83 {dimension_numbers = #tpu.dot_dimension_numbers<[1], [0], [0], [1], [0, 0, 1, 1], [], []>} : vector<16x160xf32>, vector<160x128xf32>, vector<16x128xf32> -> vector<16x128xf32>
    %106 = arith.addf %102, %105 : vector<16x128xf32>
    %c0_84 = arith.constant 0 : index
    %c4 = arith.constant 4 : index
    %c0_85 = arith.constant 0 : index
    %107 = vector.load %arg10[%c0_84, %c4, %c0_85] : memref<2x20x160xf32, #tpu.memory_space<vmem>>, vector<1x16x160xf32>
    %108 = vector.shape_cast %107 : vector<1x16x160xf32> to vector<16x160xf32>
    %cst_86 = arith.constant dense<0.000000e+00> : vector<16x128xf32>
    %109 = tpu.matmul %108, %13, %cst_86 {dimension_numbers = #tpu.dot_dimension_numbers<[1], [0], [0], [1], [0, 0, 1, 1], [], []>} : vector<16x160xf32>, vector<160x128xf32>, vector<16x128xf32> -> vector<16x128xf32>
    %110 = arith.addf %106, %109 : vector<16x128xf32>
    %cst_87 = arith.constant dense<0.000000e+00> : vector<128xf32>
    %111 = vector.multi_reduction <add>, %110, %cst_87 [0] : vector<16x128xf32> to vector<128xf32>
    %112 = vector.shape_cast %111 : vector<128xf32> to vector<1x128xf32>
    %113 = arith.addf %96, %112 : vector<1x128xf32>
    %114 = arith.mulf %110, %110 : vector<16x128xf32>
    %cst_88 = arith.constant dense<0.000000e+00> : vector<128xf32>
    %115 = vector.multi_reduction <add>, %114, %cst_88 [0] : vector<16x128xf32> to vector<128xf32>
    %116 = vector.shape_cast %115 : vector<128xf32> to vector<1x128xf32>
    %117 = arith.addf %97, %116 : vector<1x128xf32>
    %cst_89 = arith.constant 0.000000e+00 : f32
    %118 = vector.broadcast %cst_89 : f32 to vector<16x128xf32>
    %c1_90 = arith.constant 1 : index
    %c0_91 = arith.constant 0 : index
    %c0_92 = arith.constant 0 : index
    %119 = vector.load %arg10[%c1_90, %c0_91, %c0_92] : memref<2x20x160xf32, #tpu.memory_space<vmem>>, vector<1x16x160xf32>
    %120 = vector.shape_cast %119 : vector<1x16x160xf32> to vector<16x160xf32>
    %cst_93 = arith.constant dense<0.000000e+00> : vector<16x128xf32>
    %121 = tpu.matmul %120, %9, %cst_93 {dimension_numbers = #tpu.dot_dimension_numbers<[1], [0], [0], [1], [0, 0, 1, 1], [], []>} : vector<16x160xf32>, vector<160x128xf32>, vector<16x128xf32> -> vector<16x128xf32>
    %122 = arith.addf %118, %121 : vector<16x128xf32>
    %c1_94 = arith.constant 1 : index
    %c2_95 = arith.constant 2 : index
    %c0_96 = arith.constant 0 : index
    %123 = vector.load %arg10[%c1_94, %c2_95, %c0_96] : memref<2x20x160xf32, #tpu.memory_space<vmem>>, vector<1x16x160xf32>
    %124 = vector.shape_cast %123 : vector<1x16x160xf32> to vector<16x160xf32>
    %cst_97 = arith.constant dense<0.000000e+00> : vector<16x128xf32>
    %125 = tpu.matmul %124, %11, %cst_97 {dimension_numbers = #tpu.dot_dimension_numbers<[1], [0], [0], [1], [0, 0, 1, 1], [], []>} : vector<16x160xf32>, vector<160x128xf32>, vector<16x128xf32> -> vector<16x128xf32>
    %126 = arith.addf %122, %125 : vector<16x128xf32>
    %c1_98 = arith.constant 1 : index
    %c4_99 = arith.constant 4 : index
    %c0_100 = arith.constant 0 : index
    %127 = vector.load %arg10[%c1_98, %c4_99, %c0_100] : memref<2x20x160xf32, #tpu.memory_space<vmem>>, vector<1x16x160xf32>
    %128 = vector.shape_cast %127 : vector<1x16x160xf32> to vector<16x160xf32>
    %cst_101 = arith.constant dense<0.000000e+00> : vector<16x128xf32>
    %129 = tpu.matmul %128, %13, %cst_101 {dimension_numbers = #tpu.dot_dimension_numbers<[1], [0], [0], [1], [0, 0, 1, 1], [], []>} : vector<16x160xf32>, vector<160x128xf32>, vector<16x128xf32> -> vector<16x128xf32>
    %130 = arith.addf %126, %129 : vector<16x128xf32>
    %cst_102 = arith.constant dense<0.000000e+00> : vector<128xf32>
    %131 = vector.multi_reduction <add>, %130, %cst_102 [0] : vector<16x128xf32> to vector<128xf32>
    %132 = vector.shape_cast %131 : vector<128xf32> to vector<1x128xf32>
    %133 = arith.addf %113, %132 : vector<1x128xf32>
    %134 = arith.mulf %130, %130 : vector<16x128xf32>
    %cst_103 = arith.constant dense<0.000000e+00> : vector<128xf32>
    %135 = vector.multi_reduction <add>, %134, %cst_103 [0] : vector<16x128xf32> to vector<128xf32>
    %136 = vector.shape_cast %135 : vector<128xf32> to vector<1x128xf32>
    %137 = arith.addf %117, %136 : vector<1x128xf32>
    %c0_104 = arith.constant 0 : index
    %c0_105 = arith.constant 0 : index
    %138 = vector.load %arg7[%c0_104, %c0_105] : memref<1x8xf32, #tpu.memory_space<vmem>>, vector<1x8xf32>
    %c0_106 = arith.constant 0 : index
    %c0_107 = arith.constant 0 : index
    %139 = vector.load %arg8[%c0_106, %c0_107] : memref<1x8xf32, #tpu.memory_space<vmem>>, vector<1x8xf32>
    %cst_108 = arith.constant dense<0.000000e+00> : vector<1x8xf32>
    %140 = tpu.matmul %133, %0, %cst_108 {dimension_numbers = #tpu.dot_dimension_numbers<[1], [0], [0], [1], [0, 0, 1, 1], [], []>} : vector<1x128xf32>, vector<128x8xf32>, vector<1x8xf32> -> vector<1x8xf32>
    %cst_109 = arith.constant 5.120000e+02 : f32
    %141 = vector.broadcast %cst_109 : f32 to vector<1x8xf32>
    %142 = arith.divf %140, %141 : vector<1x8xf32>
    %cst_110 = arith.constant dense<0.000000e+00> : vector<1x8xf32>
    %143 = tpu.matmul %137, %0, %cst_110 {dimension_numbers = #tpu.dot_dimension_numbers<[1], [0], [0], [1], [0, 0, 1, 1], [], []>} : vector<1x128xf32>, vector<128x8xf32>, vector<1x8xf32> -> vector<1x8xf32>
    %cst_111 = arith.constant 5.120000e+02 : f32
    %144 = vector.broadcast %cst_111 : f32 to vector<1x8xf32>
    %145 = arith.divf %143, %144 : vector<1x8xf32>
    %146 = arith.mulf %142, %142 : vector<1x8xf32>
    %147 = arith.subf %145, %146 : vector<1x8xf32>
    %cst_112 = arith.constant 0.000000e+00 : f32
    %148 = vector.broadcast %cst_112 : f32 to vector<1x8xf32>
    %149 = arith.maximumf %147, %148 : vector<1x8xf32>
    %cst_113 = arith.constant 9.99999974E-6 : f32
    %150 = vector.broadcast %cst_113 : f32 to vector<1x8xf32>
    %151 = arith.addf %149, %150 : vector<1x8xf32>
    %152 = math.rsqrt %151 : vector<1x8xf32>
    %153 = arith.mulf %138, %152 : vector<1x8xf32>
    %154 = arith.mulf %142, %153 : vector<1x8xf32>
    %155 = arith.subf %139, %154 : vector<1x8xf32>
    %cst_114 = arith.constant dense<0.000000e+00> : vector<1x128xf32>
    %156 = tpu.matmul %153, %1, %cst_114 {dimension_numbers = #tpu.dot_dimension_numbers<[1], [0], [0], [1], [0, 0, 1, 1], [], []>} : vector<1x8xf32>, vector<8x128xf32>, vector<1x128xf32> -> vector<1x128xf32>
    %cst_115 = arith.constant dense<0.000000e+00> : vector<1x128xf32>
    %157 = tpu.matmul %155, %1, %cst_115 {dimension_numbers = #tpu.dot_dimension_numbers<[1], [0], [0], [1], [0, 0, 1, 1], [], []>} : vector<1x8xf32>, vector<8x128xf32>, vector<1x128xf32> -> vector<1x128xf32>
    %158 = vector.broadcast %156 : vector<1x128xf32> to vector<16x128xf32>
    %159 = arith.mulf %110, %158 : vector<16x128xf32>
    %160 = vector.broadcast %157 : vector<1x128xf32> to vector<16x128xf32>
    %161 = arith.addf %159, %160 : vector<16x128xf32>
    %162 = arith.addf %161, %81 : vector<16x128xf32>
    %cst_116 = arith.constant 0.000000e+00 : f32
    %163 = vector.broadcast %cst_116 : f32 to vector<16x128xf32>
    %164 = arith.maximumf %162, %163 : vector<16x128xf32>
    %c0_117 = arith.constant 0 : index
    %c0_118 = arith.constant 0 : index
    %c0_119 = arith.constant 0 : index
    %165 = vector.load %arg9[%c0_117, %c0_118, %c0_119] : memref<2x16x128xf32, #tpu.memory_space<vmem>>, vector<1x16x128xf32>
    %166 = vector.shape_cast %165 : vector<1x16x128xf32> to vector<16x128xf32>
    %167 = vector.shape_cast %164 : vector<16x128xf32> to vector<1x16x128xf32>
    tpu.vector_store %arg9[%c0_117, %c0_118, %c0_119], %167 {strides = array<i32>} : memref<2x16x128xf32, #tpu.memory_space<vmem>>, vector<1x16x128xf32>,
    %168 = vector.broadcast %156 : vector<1x128xf32> to vector<16x128xf32>
    %169 = arith.mulf %130, %168 : vector<16x128xf32>
    %170 = vector.broadcast %157 : vector<1x128xf32> to vector<16x128xf32>
    %171 = arith.addf %169, %170 : vector<16x128xf32>
    %172 = arith.addf %171, %90 : vector<16x128xf32>
    %cst_120 = arith.constant 0.000000e+00 : f32
    %173 = vector.broadcast %cst_120 : f32 to vector<16x128xf32>
    %174 = arith.maximumf %172, %173 : vector<16x128xf32>
    %c1_121 = arith.constant 1 : index
    %c0_122 = arith.constant 0 : index
    %c0_123 = arith.constant 0 : index
    %175 = vector.load %arg9[%c1_121, %c0_122, %c0_123] : memref<2x16x128xf32, #tpu.memory_space<vmem>>, vector<1x16x128xf32>
    %176 = vector.shape_cast %175 : vector<1x16x128xf32> to vector<16x128xf32>
    %177 = vector.shape_cast %174 : vector<16x128xf32> to vector<1x16x128xf32>
    tpu.vector_store %arg9[%c1_121, %c0_122, %c0_123], %177 {strides = array<i32>} : memref<2x16x128xf32, #tpu.memory_space<vmem>>, vector<1x16x128xf32>,
    return
  }
}

</mosaic_0001>

<llo_original>
// kernel: tile.9
$region0: #{tile.9}
  %s0 = inlined_call_operand.vmem [shape: f32[16,8,8], index: 0, kind: input, shape index: {}]
  %s1 = inlined_call_operand.vmem [shape: f32[128,8], index: 1, kind: output, shape index: {}]
  %s2 = smov 3
  %v3 = vld [vmem:[%s0] ss:$16 sm:%s2]
  %s4 = smov 12
  %v5 = vld [vmem:[%s0] ss:$16 sm:%s4]
  %vm6 = vcmask 1043458
  %v7 = vsel %vm6, %v5, %v3
  %s8 = smov 48
  %v9 = vld [vmem:[%s0] ss:$16 sm:%s8]
  %vm10 = vcmask 1045508
  %v11 = vsel %vm10, %v9, %v7
  %s12 = smov 192
  %v13 = vld [vmem:[%s0] ss:$16 sm:%s12]
  %vm14 = vcmask 1047558
  %v15 = vsel %vm14, %v13, %v11
  %vm16 = vcmask 64512
  %17 = vst.msk [vmem:[%s1] sm:$0xff] %vm16, %v15
  %s18 = scalar_lea.vmem %s0, 15
  %s19 = smov 3
  %v20 = vld [vmem:[%s18] ss:$16 sm:%s19]
  %s21 = scalar_lea.vmem %s0, 15
  %s22 = smov 12
  %v23 = vld [vmem:[%s21] ss:$16 sm:%s22]
  %vm24 = vcmask 1043458
  %v25 = vsel %vm24, %v23, %v20
  %s26 = scalar_lea.vmem %s0, 15
  %s27 = smov 48
  %v28 = vld [vmem:[%s26] ss:$16 sm:%s27]
  %vm29 = vcmask 1045508
  %v30 = vsel %vm29, %v28, %v25
  %s31 = scalar_lea.vmem %s0, 15
  %s32 = smov 192
  %v33 = vld [vmem:[%s31] ss:$16 sm:%s32]
  %vm34 = vcmask 1047558
  %v35 = vsel %vm34, %v33, %v30
  %36 = vrot.lane.b32.xlu0 %v35, 120
  %v37 = vpop.permute.xlu0 %36
  %vm38 = vcmask 1048512
  %39 = vst.msk [vmem:[%s1] sm:$0xff] %vm38, %v37
  %s40 = scalar_lea.vmem %s0, 14
  %s41 = smov 3
  %v42 = vld [vmem:[%s40] ss:$16 sm:%s41]
  %s43 = scalar_lea.vmem %s0, 14
  %s44 = smov 12
  %v45 = vld [vmem:[%s43] ss:$16 sm:%s44]
  %vm46 = vcmask 1043458
  %v47 = vsel %vm46, %v45, %v42
  %s48 = scalar_lea.vmem %s0, 14
  %s49 = smov 48
  %v50 = vld [vmem:[%s48] ss:$16 sm:%s49]
  %vm51 = vcmask 1045508
  %v52 = vsel %vm51, %v50, %v47
  %s53 = scalar_lea.vmem %s0, 14
  %s54 = smov 192
  %v55 = vld [vmem:[%s53] ss:$16 sm:%s54]
  %vm56 = vcmask 1047558
  %v57 = vsel %vm56, %v55, %v52
  %58 = vrot.lane.b32.xlu0 %v57, 112
  %v59 = vpop.permute.xlu0 %58
  %vm60 = vcmask 982912
  %61 = vst.msk [vmem:[%s1] sm:$0xff] %vm60, %v59
  %s62 = scalar_lea.vmem %s0, 13
  %s63 = smov 3
  %v64 = vld [vmem:[%s62] ss:$16 sm:%s63]
  %s65 = scalar_lea.vmem %s0, 13
  %s66 = smov 12
  %v67 = vld [vmem:[%s65] ss:$16 sm:%s66]
  %vm68 = vcmask 1043458
  %v69 = vsel %vm68, %v67, %v64
  %s70 = scalar_lea.vmem %s0, 13
  %s71 = smov 48
  %v72 = vld [vmem:[%s70] ss:$16 sm:%s71]
  %vm73 = vcmask 1045508
  %v74 = vsel %vm73, %v72, %v69
  %s75 = scalar_lea.vmem %s0, 13
  %s76 = smov 192
  %v77 = vld [vmem:[%s75] ss:$16 sm:%s76]
  %vm78 = vcmask 1047558
  %v79 = vsel %vm78, %v77, %v74
  %80 = vrot.lane.b32.xlu0 %v79, 104
  %v81 = vpop.permute.xlu0 %80
  %vm82 = vcmask 917312
  %83 = vst.msk [vmem:[%s1] sm:$0xff] %vm82, %v81
  %s84 = scalar_lea.vmem %s0, 12
  %s85 = smov 3
  %v86 = vld [vmem:[%s84] ss:$16 sm:%s85]
  %s87 = scalar_lea.vmem %s0, 12
  %s88 = smov 12
  %v89 = vld [vmem:[%s87] ss:$16 sm:%s88]
  %vm90 = vcmask 1043458
  %v91 = vsel %vm90, %v89, %v86
  %s92 = scalar_lea.vmem %s0, 12
  %s93 = smov 48
  %v94 = vld [vmem:[%s92] ss:$16 sm:%s93]
  %vm95 = vcmask 1045508
  %v96 = vsel %vm95, %v94, %v91
  %s97 = scalar_lea.vmem %s0, 12
  %s98 = smov 192
  %v99 = vld [vmem:[%s97] ss:$16 sm:%s98]
  %vm100 = vcmask 1047558
  %v101 = vsel %vm100, %v99, %v96
  %102 = vrot.lane.b32.xlu0 %v101, 96
  %v103 = vpop.permute.xlu0 %102
  %vm104 = vcmask 851712
  %105 = vst.msk [vmem:[%s1] sm:$0xff] %vm104, %v103
  %s106 = scalar_lea.vmem %s0, 11
  %s107 = smov 3
  %v108 = vld [vmem:[%s106] ss:$16 sm:%s107]
  %s109 = scalar_lea.vmem %s0, 11
  %s110 = smov 12
  %v111 = vld [vmem:[%s109] ss:$16 sm:%s110]
  %vm112 = vcmask 1043458
  %v113 = vsel %vm112, %v111, %v108
  %s114 = scalar_lea.vmem %s0, 11
  %s115 = smov 48
  %v116 = vld [vmem:[%s114] ss:$16 sm:%s115]
  %vm117 = vcmask 1045508
  %v118 = vsel %vm117, %v116, %v113
  %s119 = scalar_lea.vmem %s0, 11
  %s120 = smov 192
  %v121 = vld [vmem:[%s119] ss:$16 sm:%s120]
  %vm122 = vcmask 1047558
  %v123 = vsel %vm122, %v121, %v118
  %124 = vrot.lane.b32.xlu0 %v123, 88
  %v125 = vpop.permute.xlu0 %124
  %vm126 = vcmask 786112
  %127 = vst.msk [vmem:[%s1] sm:$0xff] %vm126, %v125
  %s128 = scalar_lea.vmem %s0, 10
  %s129 = smov 3
  %v130 = vld [vmem:[%s128] ss:$16 sm:%s129]
  %s131 = scalar_lea.vmem %s0, 10
  %s132 = smov 12
  %v133 = vld [vmem:[%s131] ss:$16 sm:%s132]
  %vm134 = vcmask 1043458
  %v135 = vsel %vm134, %v133, %v130
  %s136 = scalar_lea.vmem %s0, 10
  %s137 = smov 48
  %v138 = vld [vmem:[%s136] ss:$16 sm:%s137]
  %vm139 = vcmask 1045508
  %v140 = vsel %vm139, %v138, %v135
  %s141 = scalar_lea.vmem %s0, 10
  %s142 = smov 192
  %v143 = vld [vmem:[%s141] ss:$16 sm:%s142]
  %vm144 = vcmask 1047558
  %v145 = vsel %vm144, %v143, %v140
  %146 = vrot.lane.b32.xlu0 %v145, 80
  %v147 = vpop.permute.xlu0 %146
  %vm148 = vcmask 720512
  %149 = vst.msk [vmem:[%s1] sm:$0xff] %vm148, %v147
  %s150 = scalar_lea.vmem %s0, 9
  %s151 = smov 3
  %v152 = vld [vmem:[%s150] ss:$16 sm:%s151]
  %s153 = scalar_lea.vmem %s0, 9
  %s154 = smov 12
  %v155 = vld [vmem:[%s153] ss:$16 sm:%s154]
  %vm156 = vcmask 1043458
  %v157 = vsel %vm156, %v155, %v152
  %s158 = scalar_lea.vmem %s0, 9
  %s159 = smov 48
  %v160 = vld [vmem:[%s158] ss:$16 sm:%s159]
  %vm161 = vcmask 1045508
  %v162 = vsel %vm161, %v160, %v157
  %s163 = scalar_lea.vmem %s0, 9
  %s164 = smov 192
  %v165 = vld [vmem:[%s163] ss:$16 sm:%s164]
  %vm166 = vcmask 1047558
  %v167 = vsel %vm166, %v165, %v162
  %168 = vrot.lane.b32.xlu0 %v167, 72
  %v169 = vpop.permute.xlu0 %168
  %vm170 = vcmask 654912
  %171 = vst.msk [vmem:[%s1] sm:$0xff] %vm170, %v169
  %s172 = scalar_lea.vmem %s0, 8
  %s173 = smov 3
  %v174 = vld [vmem:[%s172] ss:$16 sm:%s173]
  %s175 = scalar_lea.vmem %s0, 8
  %s176 = smov 12
  %v177 = vld [vmem:[%s175] ss:$16 sm:%s176]
  %vm178 = vcmask 1043458
  %v179 = vsel %vm178, %v177, %v174
  %s180 = scalar_lea.vmem %s0, 8
  %s181 = smov 48
  %v182 = vld [vmem:[%s180] ss:$16 sm:%s181]
  %vm183 = vcmask 1045508
  %v184 = vsel %vm183, %v182, %v179
  %s185 = scalar_lea.vmem %s0, 8
  %s186 = smov 192
  %v187 = vld [vmem:[%s185] ss:$16 sm:%s186]
  %vm188 = vcmask 1047558
  %v189 = vsel %vm188, %v187, %v184
  %190 = vrot.lane.b32.xlu0 %v189, 64
  %v191 = vpop.permute.xlu0 %190
  %vm192 = vcmask 589312
  %193 = vst.msk [vmem:[%s1] sm:$0xff] %vm192, %v191
  %s194 = scalar_lea.vmem %s0, 7
  %s195 = smov 3
  %v196 = vld [vmem:[%s194] ss:$16 sm:%s195]
  %s197 = scalar_lea.vmem %s0, 7
  %s198 = smov 12
  %v199 = vld [vmem:[%s197] ss:$16 sm:%s198]
  %vm200 = vcmask 1043458
  %v201 = vsel %vm200, %v199, %v196
  %s202 = scalar_lea.vmem %s0, 7
  %s203 = smov 48
  %v204 = vld [vmem:[%s202] ss:$16 sm:%s203]
  %vm205 = vcmask 1045508
  %v206 = vsel %vm205, %v204, %v201
  %s207 = scalar_lea.vmem %s0, 7
  %s208 = smov 192
  %v209 = vld [vmem:[%s207] ss:$16 sm:%s208]
  %vm210 = vcmask 1047558
  %v211 = vsel %vm210, %v209, %v206
  %212 = vrot.lane.b32.xlu0 %v211, 56
  %v213 = vpop.permute.xlu0 %212
  %vm214 = vcmask 523712
  %215 = vst.msk [vmem:[%s1] sm:$0xff] %vm214, %v213
  %s216 = scalar_lea.vmem %s0, 6
  %s217 = smov 3
  %v218 = vld [vmem:[%s216] ss:$16 sm:%s217]
  %s219 = scalar_lea.vmem %s0, 6
  %s220 = smov 12
  %v221 = vld [vmem:[%s219] ss:$16 sm:%s220]
  %vm222 = vcmask 1043458
  %v223 = vsel %vm222, %v221, %v218
  %s224 = scalar_lea.vmem %s0, 6
  %s225 = smov 48
  %v226 = vld [vmem:[%s224] ss:$16 sm:%s225]
  %vm227 = vcmask 1045508
  %v228 = vsel %vm227, %v226, %v223
  %s229 = scalar_lea.vmem %s0, 6
  %s230 = smov 192
  %v231 = vld [vmem:[%s229] ss:$16 sm:%s230]
  %vm232 = vcmask 1047558
  %v233 = vsel %vm232, %v231, %v228
  %234 = vrot.lane.b32.xlu0 %v233, 48
  %v235 = vpop.permute.xlu0 %234
  %vm236 = vcmask 458112
  %237 = vst.msk [vmem:[%s1] sm:$0xff] %vm236, %v235
  %s238 = scalar_lea.vmem %s0, 5
  %s239 = smov 3
  %v240 = vld [vmem:[%s238] ss:$16 sm:%s239]
  %s241 = scalar_lea.vmem %s0, 5
  %s242 = smov 12
  %v243 = vld [vmem:[%s241] ss:$16 sm:%s242]
  %vm244 = vcmask 1043458
  %v245 = vsel %vm244, %v243, %v240
  %s246 = scalar_lea.vmem %s0, 5
  %s247 = smov 48
  %v248 = vld [vmem:[%s246] ss:$16 sm:%s247]
  %vm249 = vcmask 1045508
  %v250 = vsel %vm249, %v248, %v245
  %s251 = scalar_lea.vmem %s0, 5
  %s252 = smov 192
  %v253 = vld [vmem:[%s251] ss:$16 sm:%s252]
  %vm254 = vcmask 1047558
  %v255 = vsel %vm254, %v253, %v250
  %256 = vrot.lane.b32.xlu0 %v255, 40
  %v257 = vpop.permute.xlu0 %256
  %vm258 = vcmask 392512
  %259 = vst.msk [vmem:[%s1] sm:$0xff] %vm258, %v257
  %s260 = scalar_lea.vmem %s0, 4
  %s261 = smov 3
  %v262 = vld [vmem:[%s260] ss:$16 sm:%s261]
  %s263 = scalar_lea.vmem %s0, 4
  %s264 = smov 12
  %v265 = vld [vmem:[%s263] ss:$16 sm:%s264]
  %vm266 = vcmask 1043458
  %v267 = vsel %vm266, %v265, %v262
  %s268 = scalar_lea.vmem %s0, 4
  %s269 = smov 48
  %v270 = vld [vmem:[%s268] ss:$16 sm:%s269]
  %vm271 = vcmask 1045508
  %v272 = vsel %vm271, %v270, %v267
  %s273 = scalar_lea.vmem %s0, 4
  %s274 = smov 192
  %v275 = vld [vmem:[%s273] ss:$16 sm:%s274]
  %vm276 = vcmask 1047558
  %v277 = vsel %vm276, %v275, %v272
  %278 = vrot.lane.b32.xlu0 %v277, 32
  %v279 = vpop.permute.xlu0 %278
  %vm280 = vcmask 326912
  %281 = vst.msk [vmem:[%s1] sm:$0xff] %vm280, %v279
  %s282 = scalar_lea.vmem %s0, 3
  %s283 = smov 3
  %v284 = vld [vmem:[%s282] ss:$16 sm:%s283]
  %s285 = scalar_lea.vmem %s0, 3
  %s286 = smov 12
  %v287 = vld [vmem:[%s285] ss:$16 sm:%s286]
  %vm288 = vcmask 1043458
  %v289 = vsel %vm288, %v287, %v284
  %s290 = scalar_lea.vmem %s0, 3
  %s291 = smov 48
  %v292 = vld [vmem:[%s290] ss:$16 sm:%s291]
  %vm293 = vcmask 1045508
  %v294 = vsel %vm293, %v292, %v289
  %s295 = scalar_lea.vmem %s0, 3
  %s296 = smov 192
  %v297 = vld [vmem:[%s295] ss:$16 sm:%s296]
  %vm298 = vcmask 1047558
  %v299 = vsel %vm298, %v297, %v294
  %300 = vrot.lane.b32.xlu0 %v299, 24
  %v301 = vpop.permute.xlu0 %300
  %vm302 = vcmask 261312
  %303 = vst.msk [vmem:[%s1] sm:$0xff] %vm302, %v301
  %s304 = scalar_lea.vmem %s0, 2
  %s305 = smov 3
  %v306 = vld [vmem:[%s304] ss:$16 sm:%s305]
  %s307 = scalar_lea.vmem %s0, 2
  %s308 = smov 12
  %v309 = vld [vmem:[%s307] ss:$16 sm:%s308]
  %vm310 = vcmask 1043458
  %v311 = vsel %vm310, %v309, %v306
  %s312 = scalar_lea.vmem %s0, 2
  %s313 = smov 48
  %v314 = vld [vmem:[%s312] ss:$16 sm:%s313]
  %vm315 = vcmask 1045508
  %v316 = vsel %vm315, %v314, %v311
  %s317 = scalar_lea.vmem %s0, 2
  %s318 = smov 192
  %v319 = vld [vmem:[%s317] ss:$16 sm:%s318]
  %vm320 = vcmask 1047558
  %v321 = vsel %vm320, %v319, %v316
  %322 = vrot.lane.b32.xlu0 %v321, 16
  %v323 = vpop.permute.xlu0 %322
  %vm324 = vcmask 195712
  %325 = vst.msk [vmem:[%s1] sm:$0xff] %vm324, %v323
  %s326 = scalar_lea.vmem %s0, 1
  %s327 = smov 3
  %v328 = vld [vmem:[%s326] ss:$16 sm:%s327]
  %s329 = scalar_lea.vmem %s0, 1
  %s330 = smov 12
  %v331 = vld [vmem:[%s329] ss:$16 sm:%s330]
  %vm332 = vcmask 1043458
  %v333 = vsel %vm332, %v331, %v328
  %s334 = scalar_lea.vmem %s0, 1
  %s335 = smov 48
  %v336 = vld [vmem:[%s334] ss:$16 sm:%s335]
  %vm337 = vcmask 1045508
  %v338 = vsel %vm337, %v336, %v333
  %s339 = scalar_lea.vmem %s0, 1
  %s340 = smov 192
  %v341 = vld [vmem:[%s339] ss:$16 sm:%s340]
  %vm342 = vcmask 1047558
  %v343 = vsel %vm342, %v341, %v338
  %344 = vrot.lane.b32.xlu0 %v343, 8
  %v345 = vpop.permute.xlu0 %344
  %vm346 = vcmask 130112
  %347 = vst.msk [vmem:[%s1] sm:$0xff] %vm346, %v345

// kernel: resnet_block_forward.1
$region0: #{resnet_block_forward.1}
  #allocation0 [shape = 'u32[]', space=smem, size = 0x4, offset = 0x4, fixed_abs, tag = 'smem constant byte address 0x4 - core index']
  #allocation1 [shape = 'u32[144,128]{1,0:T(1,128)}', space=vmem, size = 0x12000, scoped, tag = 'internal scratch']
  #allocation2 [shape = 'f32[2,20,160]{2,1,0:T(8,128)}', space=vmem, size = 0xc000, scoped, tag = 'scratch operand']
  %s0 = inlined_call_operand.vmem [shape: f32[2,18,72], index: 0, kind: input, shape index: {}]
  %s1 = inlined_call_operand.vmem [shape: f32[3,72,128], index: 1, kind: input, shape index: {}]
  %s2 = inlined_call_operand.vmem [shape: f32[3,160,128], index: 2, kind: input, shape index: {}]
  %s3 = inlined_call_operand.vmem [shape: f32[128,8], index: 3, kind: input, shape index: {}]
  %s4 = inlined_call_operand.vmem [shape: f32[8,128], index: 4, kind: input, shape index: {}]
  %s5 = inlined_call_operand.vmem [shape: f32[1,8], index: 5, kind: input, shape index: {}]
  %s6 = inlined_call_operand.vmem [shape: f32[1,8], index: 6, kind: input, shape index: {}]
  %s7 = inlined_call_operand.vmem [shape: f32[1,8], index: 7, kind: input, shape index: {}]
  %s8 = inlined_call_operand.vmem [shape: f32[1,8], index: 8, kind: input, shape index: {}]
  %s9 = inlined_call_operand.vmem [shape: f32[2,16,128], index: 9, kind: output, shape index: {}]
  %s10 = sld [smem:[#allocation0]]
  $region46: #{resnet_block_forward.1} parent=0
    _
  %s12 = ssub.s32 1, %s10
  %s13 = scalar_select 0, %s12, %s10
  // Predicated region
  $region2: #{resnet_block_forward.1} parent=0 // pred_check
    _
  $region3: #{resnet_block_forward.1} parent=0 // pred_check_branch
    %15 = sbr.rel (0) target = $region5
  $region4: #{resnet_block_forward.1} parent=0 // pred_region
    _
  $region5: #{resnet_block_forward.1} parent=0 // pred_fallthru
    _
  // Predicated region
  $region6: #{resnet_block_forward.1} parent=0 // pred_check
    _
  $region7: #{resnet_block_forward.1} parent=0 // pred_check_branch
    %17 = sbr.rel (0) target = $region9
  $region8: #{resnet_block_forward.1} parent=0 // pred_region
    _
  $region9: #{resnet_block_forward.1} parent=0 // pred_fallthru
    _
  // Predicated region
  $region10: #{resnet_block_forward.1} parent=0 // pred_check
    _
  $region11: #{resnet_block_forward.1} parent=0 // pred_check_branch
    %19 = sbr.rel (0) target = $region13
  $region12: #{resnet_block_forward.1} parent=0 // pred_region
    _
  $region13: #{resnet_block_forward.1} parent=0 // pred_fallthru
    _
  // Predicated region
  $region14: #{resnet_block_forward.1} parent=0 // pred_check
    _
  $region15: #{resnet_block_forward.1} parent=0 // pred_check_branch
    %21 = sbr.rel (0) target = $region17
  $region16: #{resnet_block_forward.1} parent=0 // pred_region
    _
  $region17: #{resnet_block_forward.1} parent=0 // pred_fallthru
    _
  // Predicated region
  $region18: #{resnet_block_forward.1} parent=0 // pred_check
    _
  $region19: #{resnet_block_forward.1} parent=0 // pred_check_branch
    %23 = sbr.rel (0) target = $region21
  $region20: #{resnet_block_forward.1} parent=0 // pred_region
    _
  $region21: #{resnet_block_forward.1} parent=0 // pred_fallthru
    _
  // Predicated region
  $region22: #{resnet_block_forward.1} parent=0 // pred_check
    _
  $region23: #{resnet_block_forward.1} parent=0 // pred_check_branch
    %25 = sbr.rel (0) target = $region25
  $region24: #{resnet_block_forward.1} parent=0 // pred_region
    _
  $region25: #{resnet_block_forward.1} parent=0 // pred_fallthru
    _
  // Predicated region
  $region26: #{resnet_block_forward.1} parent=0 // pred_check
    _
  $region27: #{resnet_block_forward.1} parent=0 // pred_check_branch
    %27 = sbr.rel (0) target = $region29
  $region28: #{resnet_block_forward.1} parent=0 // pred_region
    _
  $region29: #{resnet_block_forward.1} parent=0 // pred_fallthru
    _
  // Predicated region
  $region30: #{resnet_block_forward.1} parent=0 // pred_check
    _
  $region31: #{resnet_block_forward.1} parent=0 // pred_check_branch
    %29 = sbr.rel (0) target = $region33
  $region32: #{resnet_block_forward.1} parent=0 // pred_region
    _
  $region33: #{resnet_block_forward.1} parent=0 // pred_fallthru
    _
  // Predicated region
  $region34: #{resnet_block_forward.1} parent=0 // pred_check
    _
  $region35: #{resnet_block_forward.1} parent=0 // pred_check_branch
    %31 = sbr.rel (0) target = $region37
  $region36: #{resnet_block_forward.1} parent=0 // pred_region
    _
  $region37: #{resnet_block_forward.1} parent=0 // pred_fallthru
    _
  %v32 = vld [vmem:[%s3] sm:$0xff]
  %v33 = vld [vmem:[%s3 + $0x8] sm:$0xff]
  %v34 = vld [vmem:[%s3 + $0x10] sm:$0xff]
  %v35 = vld [vmem:[%s3 + $0x18] sm:$0xff]
  %v36 = vld [vmem:[%s3 + $0x20] sm:$0xff]
  %v37 = vld [vmem:[%s3 + $0x28] sm:$0xff]
  %v38 = vld [vmem:[%s3 + $0x30] sm:$0xff]
  %v39 = vld [vmem:[%s3 + $0x38] sm:$0xff]
  %v40 = vld [vmem:[%s3 + $0x40] sm:$0xff]
  %v41 = vld [vmem:[%s3 + $0x48] sm:$0xff]
  %v42 = vld [vmem:[%s3 + $0x50] sm:$0xff]
  %v43 = vld [vmem:[%s3 + $0x58] sm:$0xff]
  %v44 = vld [vmem:[%s3 + $0x60] sm:$0xff]
  %v45 = vld [vmem:[%s3 + $0x68] sm:$0xff]
  %v46 = vld [vmem:[%s3 + $0x70] sm:$0xff]
  %v47 = vld [vmem:[%s3 + $0x78] sm:$0xff]
  %v48 = vld [vmem:[%s4] sm:$0xff]
  %v49 = vld [vmem:[%s1] sm:$0xff]
  %v50 = vld [vmem:[%s1 + $0x8] sm:$0xff]
  %v51 = vld [vmem:[%s1 + $0x10] sm:$0xff]
  %v52 = vld [vmem:[%s1 + $0x18] sm:$0xff]
  %v53 = vld [vmem:[%s1 + $0x20] sm:$0xff]
  %v54 = vld [vmem:[%s1 + $0x28] sm:$0xff]
  %v55 = vld [vmem:[%s1 + $0x30] sm:$0xff]
  %v56 = vld [vmem:[%s1 + $0x38] sm:$0xff]
  %v57 = vld [vmem:[%s1 + $0x40] sm:$0xff]
  %s58 = scalar_lea.vmem %s1, 72
  %v59 = vld [vmem:[%s58] sm:$0xff]
  %v60 = vld [vmem:[%s58 + $0x8] sm:$0xff]
  %v61 = vld [vmem:[%s58 + $0x10] sm:$0xff]
  %v62 = vld [vmem:[%s58 + $0x18] sm:$0xff]
  %v63 = vld [vmem:[%s58 + $0x20] sm:$0xff]
  %v64 = vld [vmem:[%s58 + $0x28] sm:$0xff]
  %v65 = vld [vmem:[%s58 + $0x30] sm:$0xff]
  %v66 = vld [vmem:[%s58 + $0x38] sm:$0xff]
  %v67 = vld [vmem:[%s58 + $0x40] sm:$0xff]
  %s68 = scalar_lea.vmem %s1, 144
  %v69 = vld [vmem:[%s68] sm:$0xff]
  %v70 = vld [vmem:[%s68 + $0x8] sm:$0xff]
  %v71 = vld [vmem:[%s68 + $0x10] sm:$0xff]
  %v72 = vld [vmem:[%s68 + $0x18] sm:$0xff]
  %v73 = vld [vmem:[%s68 + $0x20] sm:$0xff]
  %v74 = vld [vmem:[%s68 + $0x28] sm:$0xff]
  %v75 = vld [vmem:[%s68 + $0x30] sm:$0xff]
  %v76 = vld [vmem:[%s68 + $0x38] sm:$0xff]
  %v77 = vld [vmem:[%s68 + $0x40] sm:$0xff]
  %v78 = vld [vmem:[%s2] sm:$0xff]
  %v79 = vld [vmem:[%s2 + $0x8] sm:$0xff]
  %v80 = vld [vmem:[%s2 + $0x10] sm:$0xff]
  %v81 = vld [vmem:[%s2 + $0x18] sm:$0xff]
  %v82 = vld [vmem:[%s2 + $0x20] sm:$0xff]
  %v83 = vld [vmem:[%s2 + $0x28] sm:$0xff]
  %v84 = vld [vmem:[%s2 + $0x30] sm:$0xff]
  %v85 = vld [vmem:[%s2 + $0x38] sm:$0xff]
  %v86 = vld [vmem:[%s2 + $0x40] sm:$0xff]
  %v87 = vld [vmem:[%s2 + $0x48] sm:$0xff]
  %v88 = vld [vmem:[%s2 + $0x50] sm:$0xff]
  %v89 = vld [vmem:[%s2 + $0x58] sm:$0xff]
  %v90 = vld [vmem:[%s2 + $0x60] sm:$0xff]
  %v91 = vld [vmem:[%s2 + $0x68] sm:$0xff]
  %v92 = vld [vmem:[%s2 + $0x70] sm:$0xff]
  %v93 = vld [vmem:[%s2 + $0x78] sm:$0xff]
  %v94 = vld [vmem:[%s2 + $0x80] sm:$0xff]
  %v95 = vld [vmem:[%s2 + $0x88] sm:$0xff]
  %v96 = vld [vmem:[%s2 + $0x90] sm:$0xff]
  %v97 = vld [vmem:[%s2 + $0x98] sm:$0xff]
  %s98 = scalar_lea.vmem %s2, 160
  %v99 = vld [vmem:[%s98] sm:$0xff]
  %v100 = vld [vmem:[%s98 + $0x8] sm:$0xff]
  %v101 = vld [vmem:[%s98 + $0x10] sm:$0xff]
  %v102 = vld [vmem:[%s98 + $0x18] sm:$0xff]
  %v103 = vld [vmem:[%s98 + $0x20] sm:$0xff]
  %v104 = vld [vmem:[%s98 + $0x28] sm:$0xff]
  %v105 = vld [vmem:[%s98 + $0x30] sm:$0xff]
  %v106 = vld [vmem:[%s98 + $0x38] sm:$0xff]
  %v107 = vld [vmem:[%s98 + $0x40] sm:$0xff]
  %v108 = vld [vmem:[%s98 + $0x48] sm:$0xff]
  %v109 = vld [vmem:[%s98 + $0x50] sm:$0xff]
  %v110 = vld [vmem:[%s98 + $0x58] sm:$0xff]
  %v111 = vld [vmem:[%s98 + $0x60] sm:$0xff]
  %v112 = vld [vmem:[%s98 + $0x68] sm:$0xff]
  %v113 = vld [vmem:[%s98 + $0x70] sm:$0xff]
  %v114 = vld [vmem:[%s98 + $0x78] sm:$0xff]
  %v115 = vld [vmem:[%s98 + $0x80] sm:$0xff]
  %v116 = vld [vmem:[%s98 + $0x88] sm:$0xff]
  %v117 = vld [vmem:[%s98 + $0x90] sm:$0xff]
  %v118 = vld [vmem:[%s98 + $0x98] sm:$0xff]
  %s119 = scalar_lea.vmem %s2, 320
  %v120 = vld [vmem:[%s119] sm:$0xff]
  %v121 = vld [vmem:[%s119 + $0x8] sm:$0xff]
  %v122 = vld [vmem:[%s119 + $0x10] sm:$0xff]
  %v123 = vld [vmem:[%s119 + $0x18] sm:$0xff]
  %v124 = vld [vmem:[%s119 + $0x20] sm:$0xff]
  %v125 = vld [vmem:[%s119 + $0x28] sm:$0xff]
  %v126 = vld [vmem:[%s119 + $0x30] sm:$0xff]
  %v127 = vld [vmem:[%s119 + $0x38] sm:$0xff]
  %v128 = vld [vmem:[%s119 + $0x40] sm:$0xff]
  %v129 = vld [vmem:[%s119 + $0x48] sm:$0xff]
  %v130 = vld [vmem:[%s119 + $0x50] sm:$0xff]
  %v131 = vld [vmem:[%s119 + $0x58] sm:$0xff]
  %v132 = vld [vmem:[%s119 + $0x60] sm:$0xff]
  %v133 = vld [vmem:[%s119 + $0x68] sm:$0xff]
  %v134 = vld [vmem:[%s119 + $0x70] sm:$0xff]
  %v135 = vld [vmem:[%s119 + $0x78] sm:$0xff]
  %v136 = vld [vmem:[%s119 + $0x80] sm:$0xff]
  %v137 = vld [vmem:[%s119 + $0x88] sm:$0xff]
  %v138 = vld [vmem:[%s119 + $0x90] sm:$0xff]
  %v139 = vld [vmem:[%s119 + $0x98] sm:$0xff]
  %v140 = vld [vmem:[%s0] sm:$0xff]
  %v141 = vld [vmem:[%s0 + $0x8] sm:$0xff]
  %v142 = vld [vmem:[%s0 + $0x1] sm:$0xff]
  %v143 = vld [vmem:[%s0 + $0x9] sm:$0xff]
  %vm144 = vcmask 588800
  %v146 = vsel %vm144, %v142, 0
  %v149 = vsel %vm144, %v143, 0
  %151 = vmatprep.subr.mxu0 0.0
  %152 = vmatpush1.msra.mxu0 %v59
  %153 = vmatprep.subr.mxu0 0.0
  %154 = vmatpush1.msra.mxu0 %v60
  %155 = vmatprep.subr.mxu0 0.0
  %156 = vmatpush1.msra.mxu0 %v61
  %157 = vmatprep.subr.mxu0 0.0
  %158 = vmatpush1.msra.mxu0 %v62
  %159 = vmatprep.subr.mxu0 0.0
  %160 = vmatpush1.msra.mxu0 %v63
  %161 = vmatprep.subr.mxu0 0.0
  %162 = vmatpush1.msra.mxu0 %v64
  %163 = vmatprep.subr.mxu0 0.0
  %164 = vmatpush1.msra.mxu0 %v65
  %165 = vmatprep.subr.mxu0 0.0
  %166 = vmatpush1.msra.mxu0 %v66
  %167 = vmatprep.subr.mxu0 0.0
  %168 = vmatpush1.msra.mxu0 %v67
  %169 = vmatprep.subr.mxu0 0.0
  %170 = vmatpush1.msra.mxu0 0.0
  %171 = vmatprep.subr.mxu0 0.0
  %172 = vmatpush1.msra.mxu0 0.0
  %173 = vmatprep.subr.mxu0 0.0
  %174 = vmatpush1.msra.mxu0 0.0
  %175 = vmatprep.subr.mxu0 0.0
  %176 = vmatpush1.msra.mxu0 0.0
  %177 = vmatprep.subr.mxu0 0.0
  %178 = vmatpush1.msra.mxu0 0.0
  %179 = vmatprep.subr.mxu0 0.0
  %180 = vmatpush1.msra.mxu0 0.0
  %181 = vmatprep.subr.mxu0 0.0
  %182 = vmatpush1.msra.mxu0 0.0
  %183 = vmatprep.subr.mxu0 0.0
  %184 = vmatpush1.msra.mxu0 0.0
  %185 = vmatprep.subr.mxu0 0.0
  %186 = vmatpush1.msra.mxu0 0.0
  %187 = vmatprep.subr.mxu0 0.0
  %188 = vmatpush1.msra.mxu0 0.0
  %189 = vmatprep.subr.mxu0 0.0
  %190 = vmatpush1.msra.mxu0 0.0
  %191 = vmatprep.subr.mxu0 0.0
  %192 = vmatpush1.msra.mxu0 0.0
  %193 = vmatprep.subr.mxu0 0.0
  %194 = vmatpush1.msra.mxu0 0.0
  %195 = vmatprep.subr.mxu0 0.0
  %196 = vmatpush1.msra.mxu0 0.0
  %197 = vmatprep.subr.mxu0 0.0
  %198 = vmatpush1.msra.mxu0 0.0
  %199 = vmatprep.subr.mxu0 0.0
  %200 = vmatpush1.msra.mxu0 0.0
  %201 = vmatprep.subr.mxu0 0.0
  %202 = vmatpush1.msra.mxu0 0.0
  %203 = vmatprep.subr.mxu0 0.0
  %204 = vmatpush1.msra.mxu0 0.0
  %205 = vmatprep.subr.mxu0 0.0
  %206 = vmatpush1.msra.mxu0 0.0
  %207 = vmatprep.subr.mxu0 0.0
  %208 = vmatpush1.msra.mxu0 0.0
  %209 = vmatprep.subr.mxu0 0.0
  %210 = vmatpush1.msra.mxu0 0.0
  %211 = vmatprep.subr.mxu0 0.0
  %212 = vmatpush1.msra.mxu0 0.0
  %213 = vmatprep.subr.mxu0 0.0
  %214 = vmatpush1.msra.mxu0 0.0
  %215 = vmatprep.mubr.f32.mxu0 0.0
  %216 = vmatmul.mubr.f32.gmra.mrb[0].mxu0 %v146
  %v217 = vpop.f32.mrb[0].mxu0
  %v218 = vadd.f32 0.0, %v217
  %v219 = vpop.f32.mrb[0].mxu0
  %220 = vmatprep.mubr.f32.mxu0 0.0
  %221 = vmatmul.mubr.f32.gmra.mrb[0].mxu0 %v149
  %v222 = vpop.f32.mrb[0].mxu0
  %v223 = vadd.f32 0.0, %v222
  %v224 = vpop.f32.mrb[0].mxu0
  %225 = vdwg.mxu0
  %v227 = vsel %vm144, %v140, 0
  %v230 = vsel %vm144, %v141, 0
  %232 = vmatprep.subr.mxu0 0.0
  %233 = vmatpush1.msra.mxu0 %v49
  %234 = vmatprep.subr.mxu0 0.0
  %235 = vmatpush1.msra.mxu0 %v50
  %236 = vmatprep.subr.mxu0 0.0
  %237 = vmatpush1.msra.mxu0 %v51
  %238 = vmatprep.subr.mxu0 0.0
  %239 = vmatpush1.msra.mxu0 %v52
  %240 = vmatprep.subr.mxu0 0.0
  %241 = vmatpush1.msra.mxu0 %v53
  %242 = vmatprep.subr.mxu0 0.0
  %243 = vmatpush1.msra.mxu0 %v54
  %244 = vmatprep.subr.mxu0 0.0
  %245 = vmatpush1.msra.mxu0 %v55
  %246 = vmatprep.subr.mxu0 0.0
  %247 = vmatpush1.msra.mxu0 %v56
  %248 = vmatprep.subr.mxu0 0.0
  %249 = vmatpush1.msra.mxu0 %v57
  %250 = vmatprep.subr.mxu0 0.0
  %251 = vmatpush1.msra.mxu0 0.0
  %252 = vmatprep.subr.mxu0 0.0
  %253 = vmatpush1.msra.mxu0 0.0
  %254 = vmatprep.subr.mxu0 0.0
  %255 = vmatpush1.msra.mxu0 0.0
  %256 = vmatprep.subr.mxu0 0.0
  %257 = vmatpush1.msra.mxu0 0.0
  %258 = vmatprep.subr.mxu0 0.0
  %259 = vmatpush1.msra.mxu0 0.0
  %260 = vmatprep.subr.mxu0 0.0
  %261 = vmatpush1.msra.mxu0 0.0
  %262 = vmatprep.subr.mxu0 0.0
  %263 = vmatpush1.msra.mxu0 0.0
  %264 = vmatprep.subr.mxu0 0.0
  %265 = vmatpush1.msra.mxu0 0.0
  %266 = vmatprep.subr.mxu0 0.0
  %267 = vmatpush1.msra.mxu0 0.0
  %268 = vmatprep.subr.mxu0 0.0
  %269 = vmatpush1.msra.mxu0 0.0
  %270 = vmatprep.subr.mxu0 0.0
  %271 = vmatpush1.msra.mxu0 0.0
  %272 = vmatprep.subr.mxu0 0.0
  %273 = vmatpush1.msra.mxu0 0.0
  %274 = vmatprep.subr.mxu0 0.0
  %275 = vmatpush1.msra.mxu0 0.0
  %276 = vmatprep.subr.mxu0 0.0
  %277 = vmatpush1.msra.mxu0 0.0
  %278 = vmatprep.subr.mxu0 0.0
  %279 = vmatpush1.msra.mxu0 0.0
  %280 = vmatprep.subr.mxu0 0.0
  %281 = vmatpush1.msra.mxu0 0.0
  %282 = vmatprep.subr.mxu0 0.0
  %283 = vmatpush1.msra.mxu0 0.0
  %284 = vmatprep.subr.mxu0 0.0
  %285 = vmatpush1.msra.mxu0 0.0
  %286 = vmatprep.subr.mxu0 0.0
  %287 = vmatpush1.msra.mxu0 0.0
  %288 = vmatprep.subr.mxu0 0.0
  %289 = vmatpush1.msra.mxu0 0.0
  %290 = vmatprep.subr.mxu0 0.0
  %291 = vmatpush1.msra.mxu0 0.0
  %292 = vmatprep.subr.mxu0 0.0
  %293 = vmatpush1.msra.mxu0 0.0
  %294 = vmatprep.subr.mxu0 0.0
  %295 = vmatpush1.msra.mxu0 0.0
  %296 = vmatprep.mubr.f32.mxu0 0.0
  %297 = vmatmul.mubr.f32.gmra.mrb[0].mxu0 %v227
  %v298 = vpop.f32.mrb[0].mxu0
  %v299 = vadd.f32 %v218, %v298
  %v300 = vpop.f32.mrb[0].mxu0
  %301 = vmatprep.mubr.f32.mxu0 0.0
  %302 = vmatmul.mubr.f32.gmra.mrb[0].mxu0 %v230
  %v303 = vpop.f32.mrb[0].mxu0
  %v304 = vadd.f32 %v223, %v303
  %v305 = vpop.f32.mrb[0].mxu0
  %306 = vdwg.mxu0
  %v307 = vld [vmem:[%s0 + $0x2] sm:$0xff]
  %v308 = vld [vmem:[%s0 + $0xa] sm:$0xff]
  %v310 = vsel %vm144, %v307, 0
  %v313 = vsel %vm144, %v308, 0
  %315 = vmatprep.subr.mxu0 0.0
  %316 = vmatpush1.msra.mxu0 %v69
  %317 = vmatprep.subr.mxu0 0.0
  %318 = vmatpush1.msra.mxu0 %v70
  %319 = vmatprep.subr.mxu0 0.0
  %320 = vmatpush1.msra.mxu0 %v71
  %321 = vmatprep.subr.mxu0 0.0
  %322 = vmatpush1.msra.mxu0 %v72
  %323 = vmatprep.subr.mxu0 0.0
  %324 = vmatpush1.msra.mxu0 %v73
  %325 = vmatprep.subr.mxu0 0.0
  %326 = vmatpush1.msra.mxu0 %v74
  %327 = vmatprep.subr.mxu0 0.0
  %328 = vmatpush1.msra.mxu0 %v75
  %329 = vmatprep.subr.mxu0 0.0
  %330 = vmatpush1.msra.mxu0 %v76
  %331 = vmatprep.subr.mxu0 0.0
  %332 = vmatpush1.msra.mxu0 %v77
  %333 = vmatprep.subr.mxu0 0.0
  %334 = vmatpush1.msra.mxu0 0.0
  %335 = vmatprep.subr.mxu0 0.0
  %336 = vmatpush1.msra.mxu0 0.0
  %337 = vmatprep.subr.mxu0 0.0
  %338 = vmatpush1.msra.mxu0 0.0
  %339 = vmatprep.subr.mxu0 0.0
  %340 = vmatpush1.msra.mxu0 0.0
  %341 = vmatprep.subr.mxu0 0.0
  %342 = vmatpush1.msra.mxu0 0.0
  %343 = vmatprep.subr.mxu0 0.0
  %344 = vmatpush1.msra.mxu0 0.0
  %345 = vmatprep.subr.mxu0 0.0
  %346 = vmatpush1.msra.mxu0 0.0
  %347 = vmatprep.subr.mxu0 0.0
  %348 = vmatpush1.msra.mxu0 0.0
  %349 = vmatprep.subr.mxu0 0.0
  %350 = vmatpush1.msra.mxu0 0.0
  %351 = vmatprep.subr.mxu0 0.0
  %352 = vmatpush1.msra.mxu0 0.0
  %353 = vmatprep.subr.mxu0 0.0
  %354 = vmatpush1.msra.mxu0 0.0
  %355 = vmatprep.subr.mxu0 0.0
  %356 = vmatpush1.msra.mxu0 0.0
  %357 = vmatprep.subr.mxu0 0.0
  %358 = vmatpush1.msra.mxu0 0.0
  %359 = vmatprep.subr.mxu0 0.0
  %360 = vmatpush1.msra.mxu0 0.0
  %361 = vmatprep.subr.mxu0 0.0
  %362 = vmatpush1.msra.mxu0 0.0
  %363 = vmatprep.subr.mxu0 0.0
  %364 = vmatpush1.msra.mxu0 0.0
  %365 = vmatprep.subr.mxu0 0.0
  %366 = vmatpush1.msra.mxu0 0.0
  %367 = vmatprep.subr.mxu0 0.0
  %368 = vmatpush1.msra.mxu0 0.0
  %369 = vmatprep.subr.mxu0 0.0
  %370 = vmatpush1.msra.mxu0 0.0
  %371 = vmatprep.subr.mxu0 0.0
  %372 = vmatpush1.msra.mxu0 0.0
  %373 = vmatprep.subr.mxu0 0.0
  %374 = vmatpush1.msra.mxu0 0.0
  %375 = vmatprep.subr.mxu0 0.0
  %376 = vmatpush1.msra.mxu0 0.0
  %377 = vmatprep.subr.mxu0 0.0
  %378 = vmatpush1.msra.mxu0 0.0
  %379 = vmatprep.mubr.f32.mxu0 0.0
  %380 = vmatmul.mubr.f32.gmra.mrb[0].mxu0 %v310
  %v381 = vpop.f32.mrb[0].mxu0
  %v382 = vadd.f32 0.0, %v381
  %v383 = vpop.f32.mrb[0].mxu0
  %384 = vmatprep.mubr.f32.mxu0 0.0
  %385 = vmatmul.mubr.f32.gmra.mrb[0].mxu0 %v313
  %v386 = vpop.f32.mrb[0].mxu0
  %v387 = vadd.f32 0.0, %v386
  %v388 = vpop.f32.mrb[0].mxu0
  %389 = vdwg.mxu0
  %v390 = vadd.f32 %v299, %v382
  %v391 = vadd.f32 %v304, %v387
  %v392 = vadd.f32 %v390, %v391
  %v393 = vrot.slane %v392, 4
  %v394 = vadd.f32 %v392, %v393
  %v395 = vrot.slane %v394, 2
  %v396 = vadd.f32 %v394, %v395
  %v397 = vrot.slane %v396, 1
  %v398 = vadd.f32 %v396, %v397
  %v399 = vadd.f32 %v398, 0.0
  %v400 = vmul.f32 %v390, %v390
  %v401 = vmul.f32 %v391, %v391
  %v402 = vadd.f32 %v400, %v401
  %v403 = vrot.slane %v402, 4
  %v404 = vadd.f32 %v402, %v403
  %v405 = vrot.slane %v404, 2
  %v406 = vadd.f32 %v404, %v405
  %v407 = vrot.slane %v406, 1
  %v408 = vadd.f32 %v406, %v407
  %v409 = vadd.f32 %v408, 0.0
  %s410 = scalar_lea.vmem %s0, 24
  %v411 = vld [vmem:[%s410] sm:$0xff]
  %v412 = vld [vmem:[%s410 + $0x8] sm:$0xff]
  %v413 = vld [vmem:[%s410 + $0x1] sm:$0xff]
  %v414 = vld [vmem:[%s410 + $0x9] sm:$0xff]
  %v416 = vsel %vm144, %v413, 0
  %v419 = vsel %vm144, %v414, 0
  %421 = vmatprep.subr.mxu0 0.0
  %422 = vmatpush1.msra.mxu0 %v59
  %423 = vmatprep.subr.mxu0 0.0
  %424 = vmatpush1.msra.mxu0 %v60
  %425 = vmatprep.subr.mxu0 0.0
  %426 = vmatpush1.msra.mxu0 %v61
  %427 = vmatprep.subr.mxu0 0.0
  %428 = vmatpush1.msra.mxu0 %v62
  %429 = vmatprep.subr.mxu0 0.0
  %430 = vmatpush1.msra.mxu0 %v63
  %431 = vmatprep.subr.mxu0 0.0
  %432 = vmatpush1.msra.mxu0 %v64
  %433 = vmatprep.subr.mxu0 0.0
  %434 = vmatpush1.msra.mxu0 %v65
  %435 = vmatprep.subr.mxu0 0.0
  %436 = vmatpush1.msra.mxu0 %v66
  %437 = vmatprep.subr.mxu0 0.0
  %438 = vmatpush1.msra.mxu0 %v67
  %439 = vmatprep.subr.mxu0 0.0
  %440 = vmatpush1.msra.mxu0 0.0
  %441 = vmatprep.subr.mxu0 0.0
  %442 = vmatpush1.msra.mxu0 0.0
  %443 = vmatprep.subr.mxu0 0.0
  %444 = vmatpush1.msra.mxu0 0.0
  %445 = vmatprep.subr.mxu0 0.0
  %446 = vmatpush1.msra.mxu0 0.0
  %447 = vmatprep.subr.mxu0 0.0
  %448 = vmatpush1.msra.mxu0 0.0
  %449 = vmatprep.subr.mxu0 0.0
  %450 = vmatpush1.msra.mxu0 0.0
  %451 = vmatprep.subr.mxu0 0.0
  %452 = vmatpush1.msra.mxu0 0.0
  %453 = vmatprep.subr.mxu0 0.0
  %454 = vmatpush1.msra.mxu0 0.0
  %455 = vmatprep.subr.mxu0 0.0
  %456 = vmatpush1.msra.mxu0 0.0
  %457 = vmatprep.subr.mxu0 0.0
  %458 = vmatpush1.msra.mxu0 0.0
  %459 = vmatprep.subr.mxu0 0.0
  %460 = vmatpush1.msra.mxu0 0.0
  %461 = vmatprep.subr.mxu0 0.0
  %462 = vmatpush1.msra.mxu0 0.0
  %463 = vmatprep.subr.mxu0 0.0
  %464 = vmatpush1.msra.mxu0 0.0
  %465 = vmatprep.subr.mxu0 0.0
  %466 = vmatpush1.msra.mxu0 0.0
  %467 = vmatprep.subr.mxu0 0.0
  %468 = vmatpush1.msra.mxu0 0.0
  %469 = vmatprep.subr.mxu0 0.0
  %470 = vmatpush1.msra.mxu0 0.0
  %471 = vmatprep.subr.mxu0 0.0
  %472 = vmatpush1.msra.mxu0 0.0
  %473 = vmatprep.subr.mxu0 0.0
  %474 = vmatpush1.msra.mxu0 0.0
  %475 = vmatprep.subr.mxu0 0.0
  %476 = vmatpush1.msra.mxu0 0.0
  %477 = vmatprep.subr.mxu0 0.0
  %478 = vmatpush1.msra.mxu0 0.0
  %479 = vmatprep.subr.mxu0 0.0
  %480 = vmatpush1.msra.mxu0 0.0
  %481 = vmatprep.subr.mxu0 0.0
  %482 = vmatpush1.msra.mxu0 0.0
  %483 = vmatprep.subr.mxu0 0.0
  %484 = vmatpush1.msra.mxu0 0.0
  %485 = vmatprep.mubr.f32.mxu0 0.0
  %486 = vmatmul.mubr.f32.gmra.mrb[0].mxu0 %v416
  %v487 = vpop.f32.mrb[0].mxu0
  %v488 = vadd.f32 0.0, %v487
  %v489 = vpop.f32.mrb[0].mxu0
  %490 = vmatprep.mubr.f32.mxu0 0.0
  %491 = vmatmul.mubr.f32.gmra.mrb[0].mxu0 %v419
  %v492 = vpop.f32.mrb[0].mxu0
  %v493 = vadd.f32 0.0, %v492
  %v494 = vpop.f32.mrb[0].mxu0
  %495 = vdwg.mxu0
  %v497 = vsel %vm144, %v411, 0
  %v500 = vsel %vm144, %v412, 0
  %502 = vmatprep.subr.mxu0 0.0
  %503 = vmatpush1.msra.mxu0 %v49
  %504 = vmatprep.subr.mxu0 0.0
  %505 = vmatpush1.msra.mxu0 %v50
  %506 = vmatprep.subr.mxu0 0.0
  %507 = vmatpush1.msra.mxu0 %v51
  %508 = vmatprep.subr.mxu0 0.0
  %509 = vmatpush1.msra.mxu0 %v52
  %510 = vmatprep.subr.mxu0 0.0
  %511 = vmatpush1.msra.mxu0 %v53
  %512 = vmatprep.subr.mxu0 0.0
  %513 = vmatpush1.msra.mxu0 %v54
  %514 = vmatprep.subr.mxu0 0.0
  %515 = vmatpush1.msra.mxu0 %v55
  %516 = vmatprep.subr.mxu0 0.0
  %517 = vmatpush1.msra.mxu0 %v56
  %518 = vmatprep.subr.mxu0 0.0
  %519 = vmatpush1.msra.mxu0 %v57
  %520 = vmatprep.subr.mxu0 0.0
  %521 = vmatpush1.msra.mxu0 0.0
  %522 = vmatprep.subr.mxu0 0.0
  %523 = vmatpush1.msra.mxu0 0.0
  %524 = vmatprep.subr.mxu0 0.0
  %525 = vmatpush1.msra.mxu0 0.0
  %526 = vmatprep.subr.mxu0 0.0
  %527 = vmatpush1.msra.mxu0 0.0
  %528 = vmatprep.subr.mxu0 0.0
  %529 = vmatpush1.msra.mxu0 0.0
  %530 = vmatprep.subr.mxu0 0.0
  %531 = vmatpush1.msra.mxu0 0.0
  %532 = vmatprep.subr.mxu0 0.0
  %533 = vmatpush1.msra.mxu0 0.0
  %534 = vmatprep.subr.mxu0 0.0
  %535 = vmatpush1.msra.mxu0 0.0
  %536 = vmatprep.subr.mxu0 0.0
  %537 = vmatpush1.msra.mxu0 0.0
  %538 = vmatprep.subr.mxu0 0.0
  %539 = vmatpush1.msra.mxu0 0.0
  %540 = vmatprep.subr.mxu0 0.0
  %541 = vmatpush1.msra.mxu0 0.0
  %542 = vmatprep.subr.mxu0 0.0
  %543 = vmatpush1.msra.mxu0 0.0
  %544 = vmatprep.subr.mxu0 0.0
  %545 = vmatpush1.msra.mxu0 0.0
  %546 = vmatprep.subr.mxu0 0.0
  %547 = vmatpush1.msra.mxu0 0.0
  %548 = vmatprep.subr.mxu0 0.0
  %549 = vmatpush1.msra.mxu0 0.0
  %550 = vmatprep.subr.mxu0 0.0
  %551 = vmatpush1.msra.mxu0 0.0
  %552 = vmatprep.subr.mxu0 0.0
  %553 = vmatpush1.msra.mxu0 0.0
  %554 = vmatprep.subr.mxu0 0.0
  %555 = vmatpush1.msra.mxu0 0.0
  %556 = vmatprep.subr.mxu0 0.0
  %557 = vmatpush1.msra.mxu0 0.0
  %558 = vmatprep.subr.mxu0 0.0
  %559 = vmatpush1.msra.mxu0 0.0
  %560 = vmatprep.subr.mxu0 0.0
  %561 = vmatpush1.msra.mxu0 0.0
  %562 = vmatprep.subr.mxu0 0.0
  %563 = vmatpush1.msra.mxu0 0.0
  %564 = vmatprep.subr.mxu0 0.0
  %565 = vmatpush1.msra.mxu0 0.0
  %566 = vmatprep.mubr.f32.mxu0 0.0
  %567 = vmatmul.mubr.f32.gmra.mrb[0].mxu0 %v497
  %v568 = vpop.f32.mrb[0].mxu0
  %v569 = vadd.f32 %v488, %v568
  %v570 = vpop.f32.mrb[0].mxu0
  %571 = vmatprep.mubr.f32.mxu0 0.0
  %572 = vmatmul.mubr.f32.gmra.mrb[0].mxu0 %v500
  %v573 = vpop.f32.mrb[0].mxu0
  %v574 = vadd.f32 %v493, %v573
  %v575 = vpop.f32.mrb[0].mxu0
  %576 = vdwg.mxu0
  %v577 = vld [vmem:[%s410 + $0x2] sm:$0xff]
  %v578 = vld [vmem:[%s410 + $0xa] sm:$0xff]
  %v580 = vsel %vm144, %v577, 0
  %v583 = vsel %vm144, %v578, 0
  %585 = vmatprep.subr.mxu0 0.0
  %586 = vmatpush1.msra.mxu0 %v69
  %587 = vmatprep.subr.mxu0 0.0
  %588 = vmatpush1.msra.mxu0 %v70
  %589 = vmatprep.subr.mxu0 0.0
  %590 = vmatpush1.msra.mxu0 %v71
  %591 = vmatprep.subr.mxu0 0.0
  %592 = vmatpush1.msra.mxu0 %v72
  %593 = vmatprep.subr.mxu0 0.0
  %594 = vmatpush1.msra.mxu0 %v73
  %595 = vmatprep.subr.mxu0 0.0
  %596 = vmatpush1.msra.mxu0 %v74
  %597 = vmatprep.subr.mxu0 0.0
  %598 = vmatpush1.msra.mxu0 %v75
  %599 = vmatprep.subr.mxu0 0.0
  %600 = vmatpush1.msra.mxu0 %v76
  %601 = vmatprep.subr.mxu0 0.0
  %602 = vmatpush1.msra.mxu0 %v77
  %603 = vmatprep.subr.mxu0 0.0
  %604 = vmatpush1.msra.mxu0 0.0
  %605 = vmatprep.subr.mxu0 0.0
  %606 = vmatpush1.msra.mxu0 0.0
  %607 = vmatprep.subr.mxu0 0.0
  %608 = vmatpush1.msra.mxu0 0.0
  %609 = vmatprep.subr.mxu0 0.0
  %610 = vmatpush1.msra.mxu0 0.0
  %611 = vmatprep.subr.mxu0 0.0
  %612 = vmatpush1.msra.mxu0 0.0
  %613 = vmatprep.subr.mxu0 0.0
  %614 = vmatpush1.msra.mxu0 0.0
  %615 = vmatprep.subr.mxu0 0.0
  %616 = vmatpush1.msra.mxu0 0.0
  %617 = vmatprep.subr.mxu0 0.0
  %618 = vmatpush1.msra.mxu0 0.0
  %619 = vmatprep.subr.mxu0 0.0
  %620 = vmatpush1.msra.mxu0 0.0
  %621 = vmatprep.subr.mxu0 0.0
  %622 = vmatpush1.msra.mxu0 0.0
  %623 = vmatprep.subr.mxu0 0.0
  %624 = vmatpush1.msra.mxu0 0.0
  %625 = vmatprep.subr.mxu0 0.0
  %626 = vmatpush1.msra.mxu0 0.0
  %627 = vmatprep.subr.mxu0 0.0
  %628 = vmatpush1.msra.mxu0 0.0
  %629 = vmatprep.subr.mxu0 0.0
  %630 = vmatpush1.msra.mxu0 0.0
  %631 = vmatprep.subr.mxu0 0.0
  %632 = vmatpush1.msra.mxu0 0.0
  %633 = vmatprep.subr.mxu0 0.0
  %634 = vmatpush1.msra.mxu0 0.0
  %635 = vmatprep.subr.mxu0 0.0
  %636 = vmatpush1.msra.mxu0 0.0
  %637 = vmatprep.subr.mxu0 0.0
  %638 = vmatpush1.msra.mxu0 0.0
  %639 = vmatprep.subr.mxu0 0.0
  %640 = vmatpush1.msra.mxu0 0.0
  %641 = vmatprep.subr.mxu0 0.0
  %642 = vmatpush1.msra.mxu0 0.0
  %643 = vmatprep.subr.mxu0 0.0
  %644 = vmatpush1.msra.mxu0 0.0
  %645 = vmatprep.subr.mxu0 0.0
  %646 = vmatpush1.msra.mxu0 0.0
  %647 = vmatprep.subr.mxu0 0.0
  %648 = vmatpush1.msra.mxu0 0.0
  %649 = vmatprep.mubr.f32.mxu0 0.0
  %650 = vmatmul.mubr.f32.gmra.mrb[0].mxu0 %v580
  %v651 = vpop.f32.mrb[0].mxu0
  %v652 = vadd.f32 0.0, %v651
  %v653 = vpop.f32.mrb[0].mxu0
  %654 = vmatprep.mubr.f32.mxu0 0.0
  %655 = vmatmul.mubr.f32.gmra.mrb[0].mxu0 %v583
  %v656 = vpop.f32.mrb[0].mxu0
  %v657 = vadd.f32 0.0, %v656
  %v658 = vpop.f32.mrb[0].mxu0
  %659 = vdwg.mxu0
  %v660 = vadd.f32 %v569, %v652
  %v661 = vadd.f32 %v574, %v657
  %v662 = vadd.f32 %v660, %v661
  %v663 = vrot.slane %v662, 4
  %v664 = vadd.f32 %v662, %v663
  %v665 = vrot.slane %v664, 2
  %v666 = vadd.f32 %v664, %v665
  %v667 = vrot.slane %v666, 1
  %v668 = vadd.f32 %v666, %v667
  %v669 = vadd.f32 %v399, %v668
  %v670 = vmul.f32 %v660, %v660
  %v671 = vmul.f32 %v661, %v661
  %v672 = vadd.f32 %v670, %v671
  %v673 = vrot.slane %v672, 4
  %v674 = vadd.f32 %v672, %v673
  %v675 = vrot.slane %v674, 2
  %v676 = vadd.f32 %v674, %v675
  %v677 = vrot.slane %v676, 1
  %v678 = vadd.f32 %v676, %v677
  %v679 = vadd.f32 %v409, %v678
  %v680 = vld [vmem:[%s5] sm:$0x1]
  %v681 = vld [vmem:[%s6] sm:$0x1]
  %682 = vmatprep.subr.mxu0 0.0
  %683 = vmatpush1.msra.mxu0 %v32
  %684 = vmatprep.subr.mxu0 0.0
  %685 = vmatpush1.msra.mxu0 %v33
  %686 = vmatprep.subr.mxu0 0.0
  %687 = vmatpush1.msra.mxu0 %v34
  %688 = vmatprep.subr.mxu0 0.0
  %689 = vmatpush1.msra.mxu0 %v35
  %690 = vmatprep.subr.mxu0 0.0
  %691 = vmatpush1.msra.mxu0 %v36
  %692 = vmatprep.subr.mxu0 0.0
  %693 = vmatpush1.msra.mxu0 %v37
  %694 = vmatprep.subr.mxu0 0.0
  %695 = vmatpush1.msra.mxu0 %v38
  %696 = vmatprep.subr.mxu0 0.0
  %697 = vmatpush1.msra.mxu0 %v39
  %698 = vmatprep.subr.mxu0 0.0
  %699 = vmatpush1.msra.mxu0 %v40
  %700 = vmatprep.subr.mxu0 0.0
  %701 = vmatpush1.msra.mxu0 %v41
  %702 = vmatprep.subr.mxu0 0.0
  %703 = vmatpush1.msra.mxu0 %v42
  %704 = vmatprep.subr.mxu0 0.0
  %705 = vmatpush1.msra.mxu0 %v43
  %706 = vmatprep.subr.mxu0 0.0
  %707 = vmatpush1.msra.mxu0 %v44
  %708 = vmatprep.subr.mxu0 0.0
  %709 = vmatpush1.msra.mxu0 %v45
  %710 = vmatprep.subr.mxu0 0.0
  %711 = vmatpush1.msra.mxu0 %v46
  %712 = vmatprep.subr.mxu0 0.0
  %713 = vmatpush1.msra.mxu0 %v47
  %714 = vmatprep.subr.mxu0 0.0
  %715 = vmatpush1.msra.mxu0 0.0
  %716 = vmatprep.subr.mxu0 0.0
  %717 = vmatpush1.msra.mxu0 0.0
  %718 = vmatprep.subr.mxu0 0.0
  %719 = vmatpush1.msra.mxu0 0.0
  %720 = vmatprep.subr.mxu0 0.0
  %721 = vmatpush1.msra.mxu0 0.0
  %722 = vmatprep.subr.mxu0 0.0
  %723 = vmatpush1.msra.mxu0 0.0
  %724 = vmatprep.subr.mxu0 0.0
  %725 = vmatpush1.msra.mxu0 0.0
  %726 = vmatprep.subr.mxu0 0.0
  %727 = vmatpush1.msra.mxu0 0.0
  %728 = vmatprep.subr.mxu0 0.0
  %729 = vmatpush1.msra.mxu0 0.0
  %730 = vmatprep.subr.mxu0 0.0
  %731 = vmatpush1.msra.mxu0 0.0
  %732 = vmatprep.subr.mxu0 0.0
  %733 = vmatpush1.msra.mxu0 0.0
  %734 = vmatprep.subr.mxu0 0.0
  %735 = vmatpush1.msra.mxu0 0.0
  %736 = vmatprep.subr.mxu0 0.0
  %737 = vmatpush1.msra.mxu0 0.0
  %738 = vmatprep.subr.mxu0 0.0
  %739 = vmatpush1.msra.mxu0 0.0
  %740 = vmatprep.subr.mxu0 0.0
  %741 = vmatpush1.msra.mxu0 0.0
  %742 = vmatprep.subr.mxu0 0.0
  %743 = vmatpush1.msra.mxu0 0.0
  %744 = vmatprep.subr.mxu0 0.0
  %745 = vmatpush1.msra.mxu0 0.0
  %746 = vmatprep.mubr.f32.mxu0 0.0
  %747 = vmatmul.mubr.f32.gmra.mrb[0].mxu0 %v669
  %v748 = vpop.f32.mrb[0].mxu0
  %v749 = vadd.f32 0.0, %v748
  %v750 = vpop.f32.mrb[0].mxu0
  %751 = vdwg.mxu0
  %v752 = vrcp.pop 512.0
  %v753 = vmul.f32 %v749, %v752
  %754 = vmatprep.subr.mxu0 0.0
  %755 = vmatpush1.msra.mxu0 %v32
  %756 = vmatprep.subr.mxu0 0.0
  %757 = vmatpush1.msra.mxu0 %v33
  %758 = vmatprep.subr.mxu0 0.0
  %759 = vmatpush1.msra.mxu0 %v34
  %760 = vmatprep.subr.mxu0 0.0
  %761 = vmatpush1.msra.mxu0 %v35
  %762 = vmatprep.subr.mxu0 0.0
  %763 = vmatpush1.msra.mxu0 %v36
  %764 = vmatprep.subr.mxu0 0.0
  %765 = vmatpush1.msra.mxu0 %v37
  %766 = vmatprep.subr.mxu0 0.0
  %767 = vmatpush1.msra.mxu0 %v38
  %768 = vmatprep.subr.mxu0 0.0
  %769 = vmatpush1.msra.mxu0 %v39
  %770 = vmatprep.subr.mxu0 0.0
  %771 = vmatpush1.msra.mxu0 %v40
  %772 = vmatprep.subr.mxu0 0.0
  %773 = vmatpush1.msra.mxu0 %v41
  %774 = vmatprep.subr.mxu0 0.0
  %775 = vmatpush1.msra.mxu0 %v42
  %776 = vmatprep.subr.mxu0 0.0
  %777 = vmatpush1.msra.mxu0 %v43
  %778 = vmatprep.subr.mxu0 0.0
  %779 = vmatpush1.msra.mxu0 %v44
  %780 = vmatprep.subr.mxu0 0.0
  %781 = vmatpush1.msra.mxu0 %v45
  %782 = vmatprep.subr.mxu0 0.0
  %783 = vmatpush1.msra.mxu0 %v46
  %784 = vmatprep.subr.mxu0 0.0
  %785 = vmatpush1.msra.mxu0 %v47
  %786 = vmatprep.subr.mxu0 0.0
  %787 = vmatpush1.msra.mxu0 0.0
  %788 = vmatprep.subr.mxu0 0.0
  %789 = vmatpush1.msra.mxu0 0.0
  %790 = vmatprep.subr.mxu0 0.0
  %791 = vmatpush1.msra.mxu0 0.0
  %792 = vmatprep.subr.mxu0 0.0
  %793 = vmatpush1.msra.mxu0 0.0
  %794 = vmatprep.subr.mxu0 0.0
  %795 = vmatpush1.msra.mxu0 0.0
  %796 = vmatprep.subr.mxu0 0.0
  %797 = vmatpush1.msra.mxu0 0.0
  %798 = vmatprep.subr.mxu0 0.0
  %799 = vmatpush1.msra.mxu0 0.0
  %800 = vmatprep.subr.mxu0 0.0
  %801 = vmatpush1.msra.mxu0 0.0
  %802 = vmatprep.subr.mxu0 0.0
  %803 = vmatpush1.msra.mxu0 0.0
  %804 = vmatprep.subr.mxu0 0.0
  %805 = vmatpush1.msra.mxu0 0.0
  %806 = vmatprep.subr.mxu0 0.0
  %807 = vmatpush1.msra.mxu0 0.0
  %808 = vmatprep.subr.mxu0 0.0
  %809 = vmatpush1.msra.mxu0 0.0
  %810 = vmatprep.subr.mxu0 0.0
  %811 = vmatpush1.msra.mxu0 0.0
  %812 = vmatprep.subr.mxu0 0.0
  %813 = vmatpush1.msra.mxu0 0.0
  %814 = vmatprep.subr.mxu0 0.0
  %815 = vmatpush1.msra.mxu0 0.0
  %816 = vmatprep.subr.mxu0 0.0
  %817 = vmatpush1.msra.mxu0 0.0
  %818 = vmatprep.mubr.f32.mxu0 0.0
  %819 = vmatmul.mubr.f32.gmra.mrb[0].mxu0 %v679
  %v820 = vpop.f32.mrb[0].mxu0
  %v821 = vadd.f32 0.0, %v820
  %v822 = vpop.f32.mrb[0].mxu0
  %823 = vdwg.mxu0
  %v824 = vmul.f32 %v821, %v752
  %v825 = vmul.f32 %v753, %v753
  %v826 = vsub.f32 %v824, %v825
  %v827 = vmax.f32 %v826, 0.0
  %v828 = vadd.f32 %v827, 1e-05
  %v829 = vrsqrt.pop %v828
  %v830 = vmul.f32 %v680, %v829
  %v831 = vmul.f32 %v753, %v830
  %v832 = vsub.f32 %v681, %v831
  %vm833 = vcmask 64512
  %v835 = vsel %vm833, %v830, 0
  %837 = vmatprep.subr.mxu0 0.0
  %838 = vmatpush1.msra.mxu0 %v48
  %839 = vmatprep.subr.mxu0 0.0
  %840 = vmatpush1.msra.mxu0 0.0
  %841 = vmatprep.subr.mxu0 0.0
  %842 = vmatpush1.msra.mxu0 0.0
  %843 = vmatprep.subr.mxu0 0.0
  %844 = vmatpush1.msra.mxu0 0.0
  %845 = vmatprep.subr.mxu0 0.0
  %846 = vmatpush1.msra.mxu0 0.0
  %847 = vmatprep.subr.mxu0 0.0
  %848 = vmatpush1.msra.mxu0 0.0
  %849 = vmatprep.subr.mxu0 0.0
  %850 = vmatpush1.msra.mxu0 0.0
  %851 = vmatprep.subr.mxu0 0.0
  %852 = vmatpush1.msra.mxu0 0.0
  %853 = vmatprep.subr.mxu0 0.0
  %854 = vmatpush1.msra.mxu0 0.0
  %855 = vmatprep.subr.mxu0 0.0
  %856 = vmatpush1.msra.mxu0 0.0
  %857 = vmatprep.subr.mxu0 0.0
  %858 = vmatpush1.msra.mxu0 0.0
  %859 = vmatprep.subr.mxu0 0.0
  %860 = vmatpush1.msra.mxu0 0.0
  %861 = vmatprep.subr.mxu0 0.0
  %862 = vmatpush1.msra.mxu0 0.0
  %863 = vmatprep.subr.mxu0 0.0
  %864 = vmatpush1.msra.mxu0 0.0
  %865 = vmatprep.subr.mxu0 0.0
  %866 = vmatpush1.msra.mxu0 0.0
  %867 = vmatprep.subr.mxu0 0.0
  %868 = vmatpush1.msra.mxu0 0.0
  %869 = vmatprep.subr.mxu0 0.0
  %870 = vmatpush1.msra.mxu0 0.0
  %871 = vmatprep.subr.mxu0 0.0
  %872 = vmatpush1.msra.mxu0 0.0
  %873 = vmatprep.subr.mxu0 0.0
  %874 = vmatpush1.msra.mxu0 0.0
  %875 = vmatprep.subr.mxu0 0.0
  %876 = vmatpush1.msra.mxu0 0.0
  %877 = vmatprep.subr.mxu0 0.0
  %878 = vmatpush1.msra.mxu0 0.0
  %879 = vmatprep.subr.mxu0 0.0
  %880 = vmatpush1.msra.mxu0 0.0
  %881 = vmatprep.subr.mxu0 0.0
  %882 = vmatpush1.msra.mxu0 0.0
  %883 = vmatprep.subr.mxu0 0.0
  %884 = vmatpush1.msra.mxu0 0.0
  %885 = vmatprep.subr.mxu0 0.0
  %886 = vmatpush1.msra.mxu0 0.0
  %887 = vmatprep.subr.mxu0 0.0
  %888 = vmatpush1.msra.mxu0 0.0
  %889 = vmatprep.subr.mxu0 0.0
  %890 = vmatpush1.msra.mxu0 0.0
  %891 = vmatprep.subr.mxu0 0.0
  %892 = vmatpush1.msra.mxu0 0.0
  %893 = vmatprep.subr.mxu0 0.0
  %894 = vmatpush1.msra.mxu0 0.0
  %895 = vmatprep.subr.mxu0 0.0
  %896 = vmatpush1.msra.mxu0 0.0
  %897 = vmatprep.subr.mxu0 0.0
  %898 = vmatpush1.msra.mxu0 0.0
  %899 = vmatprep.subr.mxu0 0.0
  %900 = vmatpush1.msra.mxu0 0.0
  %901 = vmatprep.mubr.f32.mxu0 0.0
  %902 = vmatmul.mubr.f32.gmra.mrb[0].mxu0 %v835
  %v903 = vpop.f32.mrb[0].mxu0
  %v904 = vadd.f32 0.0, %v903
  %v905 = vpop.f32.mrb[0].mxu0
  %906 = vdwg.mxu0
  %v908 = vsel %vm833, %v832, 0
  %910 = vmatprep.subr.mxu0 0.0
  %911 = vmatpush1.msra.mxu0 %v48
  %912 = vmatprep.subr.mxu0 0.0
  %913 = vmatpush1.msra.mxu0 0.0
  %914 = vmatprep.subr.mxu0 0.0
  %915 = vmatpush1.msra.mxu0 0.0
  %916 = vmatprep.subr.mxu0 0.0
  %917 = vmatpush1.msra.mxu0 0.0
  %918 = vmatprep.subr.mxu0 0.0
  %919 = vmatpush1.msra.mxu0 0.0
  %920 = vmatprep.subr.mxu0 0.0
  %921 = vmatpush1.msra.mxu0 0.0
  %922 = vmatprep.subr.mxu0 0.0
  %923 = vmatpush1.msra.mxu0 0.0
  %924 = vmatprep.subr.mxu0 0.0
  %925 = vmatpush1.msra.mxu0 0.0
  %926 = vmatprep.subr.mxu0 0.0
  %927 = vmatpush1.msra.mxu0 0.0
  %928 = vmatprep.subr.mxu0 0.0
  %929 = vmatpush1.msra.mxu0 0.0
  %930 = vmatprep.subr.mxu0 0.0
  %931 = vmatpush1.msra.mxu0 0.0
  %932 = vmatprep.subr.mxu0 0.0
  %933 = vmatpush1.msra.mxu0 0.0
  %934 = vmatprep.subr.mxu0 0.0
  %935 = vmatpush1.msra.mxu0 0.0
  %936 = vmatprep.subr.mxu0 0.0
  %937 = vmatpush1.msra.mxu0 0.0
  %938 = vmatprep.subr.mxu0 0.0
  %939 = vmatpush1.msra.mxu0 0.0
  %940 = vmatprep.subr.mxu0 0.0
  %941 = vmatpush1.msra.mxu0 0.0
  %942 = vmatprep.subr.mxu0 0.0
  %943 = vmatpush1.msra.mxu0 0.0
  %944 = vmatprep.subr.mxu0 0.0
  %945 = vmatpush1.msra.mxu0 0.0
  %946 = vmatprep.subr.mxu0 0.0
  %947 = vmatpush1.msra.mxu0 0.0
  %948 = vmatprep.subr.mxu0 0.0
  %949 = vmatpush1.msra.mxu0 0.0
  %950 = vmatprep.subr.mxu0 0.0
  %951 = vmatpush1.msra.mxu0 0.0
  %952 = vmatprep.subr.mxu0 0.0
  %953 = vmatpush1.msra.mxu0 0.0
  %954 = vmatprep.subr.mxu0 0.0
  %955 = vmatpush1.msra.mxu0 0.0
  %956 = vmatprep.subr.mxu0 0.0
  %957 = vmatpush1.msra.mxu0 0.0
  %958 = vmatprep.subr.mxu0 0.0
  %959 = vmatpush1.msra.mxu0 0.0
  %960 = vmatprep.subr.mxu0 0.0
  %961 = vmatpush1.msra.mxu0 0.0
  %962 = vmatprep.subr.mxu0 0.0
  %963 = vmatpush1.msra.mxu0 0.0
  %964 = vmatprep.subr.mxu0 0.0
  %965 = vmatpush1.msra.mxu0 0.0
  %966 = vmatprep.subr.mxu0 0.0
  %967 = vmatpush1.msra.mxu0 0.0
  %968 = vmatprep.subr.mxu0 0.0
  %969 = vmatpush1.msra.mxu0 0.0
  %970 = vmatprep.subr.mxu0 0.0
  %971 = vmatpush1.msra.mxu0 0.0
  %972 = vmatprep.subr.mxu0 0.0
  %973 = vmatpush1.msra.mxu0 0.0
  %974 = vmatprep.mubr.f32.mxu0 0.0
  %975 = vmatmul.mubr.f32.gmra.mrb[0].mxu0 %v908
  %v976 = vpop.f32.mrb[0].mxu0
  %v977 = vadd.f32 0.0, %v976
  %v978 = vpop.f32.mrb[0].mxu0
  %979 = vdwg.mxu0
  %980 = vst [vmem:[#allocation2] sm:$0xff] 0.0
  %vm981 = vcmask 261120
  %982 = vst.msk [vmem:[#allocation2 + $0x8] sm:$0xff] %vm981, 0.0
  %983 = vst [vmem:[#allocation2 + $0x10] sm:$0xff] 0.0
  %984 = vst.msk [vmem:[#allocation2 + $0x18] sm:$0xff] %vm981, 0.0
  %985 = vst [vmem:[#allocation2 + $0x20] sm:$0xf] 0.0
  %vm986 = vcmask 257024
  %987 = vst.msk [vmem:[#allocation2 + $0x28] sm:$0xf] %vm986, 0.0
  %988 = vst [vmem:[#allocation2 + $0x30] sm:$0xff] 0.0
  %989 = vst.msk [vmem:[#allocation2 + $0x38] sm:$0xff] %vm981, 0.0
  %990 = vst [vmem:[#allocation2 + $0x40] sm:$0xff] 0.0
  %991 = vst.msk [vmem:[#allocation2 + $0x48] sm:$0xff] %vm981, 0.0
  %992 = vst [vmem:[#allocation2 + $0x50] sm:$0xf] 0.0
  %993 = vst.msk [vmem:[#allocation2 + $0x58] sm:$0xf] %vm986, 0.0
  %v994 = vlaneseq
  %v995 = vshrl.u32 %v994, 7
  %v996 = vsub.s32 0, %v995
  %v997 = vrot.slane %v904, %v996
  %v998 = vmul.f32 %v390, %v997
  %v999 = vmul.f32 %v391, %v997
  %v1000 = vlaneseq
  %v1001 = vshrl.u32 %v1000, 7
  %v1002 = vsub.s32 0, %v1001
  %v1003 = vrot.slane %v977, %v1002
  %v1004 = vadd.f32 %v998, %v1003
  %v1005 = vadd.f32 %v999, %v1003
  %v1006 = vmax.f32 %v1004, 0.0
  %v1007 = vmax.f32 %v1005, 0.0
  %vm1010 = vcmask 1041408
  %v1011 = vrot.slane %v1006, 6
  %v1012 = vrot.slane %v1007, 6
  %v1013 = vsel %vm1010, %v1011, %v1012
  %1014 = vrot.lane.b32.xlu0 %v1011, 16
  %v1015 = vpop.permute.xlu0 %1014
  %1016 = vrot.lane.b32.xlu0 %v1013, 16
  %v1017 = vpop.permute.xlu0 %1016
  %1018 = vrot.lane.b32.xlu0 %v1012, 16
  %v1019 = vpop.permute.xlu0 %1018
  %vm1023 = vcmask 1047682
  %1024 = vst.msk [vmem:[#allocation2] sm:$0xfc] %vm1023, %v1015
  %vm1025 = vcmask 130050
  %1026 = vst.msk [vmem:[#allocation2 + $0x8] sm:$0xfc] %vm1025, %v1015
  %vm1027 = vcmask 1047680
  %1028 = vst.msk [vmem:[#allocation2 + $0x10] sm:$0xff] %vm1027, %v1017
  %vm1029 = vcmask 130048
  %1030 = vst.msk [vmem:[#allocation2 + $0x18] sm:$0xff] %vm1029, %v1017
  %vm1031 = vcmask 1041536
  %1032 = vst.msk [vmem:[#allocation2 + $0x20] sm:$0x3] %vm1031, %v1019
  %vm1033 = vcmask 123904
  %1034 = vst.msk [vmem:[#allocation2 + $0x28] sm:$0x3] %vm1033, %v1019
  %v1035 = vmul.f32 %v660, %v997
  %v1036 = vmul.f32 %v661, %v997
  %v1037 = vadd.f32 %v1035, %v1003
  %v1038 = vadd.f32 %v1036, %v1003
  %v1039 = vmax.f32 %v1037, 0.0
  %v1040 = vmax.f32 %v1038, 0.0
  %v1043 = vrot.slane %v1039, 6
  %v1044 = vrot.slane %v1040, 6
  %v1045 = vsel %vm1010, %v1043, %v1044
  %1046 = vrot.lane.b32.xlu0 %v1043, 16
  %v1047 = vpop.permute.xlu0 %1046
  %1048 = vrot.lane.b32.xlu0 %v1045, 16
  %v1049 = vpop.permute.xlu0 %1048
  %1050 = vrot.lane.b32.xlu0 %v1044, 16
  %v1051 = vpop.permute.xlu0 %1050
  %s1055 = scalar_lea.vmem [#allocation2], 48
  %1056 = vst.msk [vmem:[%s1055] sm:$0xfc] %vm1023, %v1047
  %1057 = vst.msk [vmem:[%s1055 + $0x8] sm:$0xfc] %vm1025, %v1047
  %1058 = vst.msk [vmem:[%s1055 + $0x10] sm:$0xff] %vm1027, %v1049
  %1059 = vst.msk [vmem:[%s1055 + $0x18] sm:$0xff] %vm1029, %v1049
  %1060 = vst.msk [vmem:[%s1055 + $0x20] sm:$0x3] %vm1031, %v1051
  %1061 = vst.msk [vmem:[%s1055 + $0x28] sm:$0x3] %vm1033, %v1051
  %v1062 = vld [vmem:[#allocation2] sm:$0xff]
  %v1063 = vld [vmem:[#allocation2 + $0x8] sm:$0xff]
  %v1064 = vld [vmem:[#allocation2 + $0x10] sm:$0xff]
  %v1065 = vld [vmem:[#allocation2 + $0x18] sm:$0xff]
  %v1066 = vld [vmem:[#allocation2] sm:$0xfc]
  %v1067 = vld [vmem:[#allocation2 + $0x8] sm:$0xfc]
  %v1068 = vld [vmem:[#allocation2 + $0x20] sm:$0x3]
  %v1069 = vld [vmem:[#allocation2 + $0x28] sm:$0x3]
  %vm1076 = vcmask 1045504
  %v1077 = vrot.slane %v1066, 2
  %v1078 = vrot.slane %v1064, 2
  %v1079 = vsel %vm1076, %v1077, %v1078
  %v1080 = vrot.slane %v1067, 2
  %v1081 = vrot.slane %v1065, 2
  %v1082 = vsel %vm1076, %v1080, %v1081
  %v1083 = vrot.slane %v1068, 2
  %v1084 = vsel %vm1076, %v1078, %v1083
  %v1085 = vrot.slane %v1069, 2
  %v1086 = vsel %vm1076, %v1081, %v1085
  %v1089 = vsel %vm981, %v1082, 0
  %v1091 = vsel %vm981, %v1086, 0
  %1093 = vmatprep.subr.mxu0 0.0
  %1094 = vmatpush1.msra.mxu0 %v99
  %1095 = vmatprep.subr.mxu0 0.0
  %1096 = vmatpush1.msra.mxu0 %v100
  %1097 = vmatprep.subr.mxu0 0.0
  %1098 = vmatpush1.msra.mxu0 %v101
  %1099 = vmatprep.subr.mxu0 0.0
  %1100 = vmatpush1.msra.mxu0 %v102
  %1101 = vmatprep.subr.mxu0 0.0
  %1102 = vmatpush1.msra.mxu0 %v103
  %1103 = vmatprep.subr.mxu0 0.0
  %1104 = vmatpush1.msra.mxu0 %v104
  %1105 = vmatprep.subr.mxu0 0.0
  %1106 = vmatpush1.msra.mxu0 %v105
  %1107 = vmatprep.subr.mxu0 0.0
  %1108 = vmatpush1.msra.mxu0 %v106
  %1109 = vmatprep.subr.mxu0 0.0
  %1110 = vmatpush1.msra.mxu0 %v107
  %1111 = vmatprep.subr.mxu0 0.0
  %1112 = vmatpush1.msra.mxu0 %v108
  %1113 = vmatprep.subr.mxu0 0.0
  %1114 = vmatpush1.msra.mxu0 %v109
  %1115 = vmatprep.subr.mxu0 0.0
  %1116 = vmatpush1.msra.mxu0 %v110
  %1117 = vmatprep.subr.mxu0 0.0
  %1118 = vmatpush1.msra.mxu0 %v111
  %1119 = vmatprep.subr.mxu0 0.0
  %1120 = vmatpush1.msra.mxu0 %v112
  %1121 = vmatprep.subr.mxu0 0.0
  %1122 = vmatpush1.msra.mxu0 %v113
  %1123 = vmatprep.subr.mxu0 0.0
  %1124 = vmatpush1.msra.mxu0 %v114
  %1125 = vmatprep.subr.mxu0 0.0
  %1126 = vmatpush1.msra.mxu0 %v115
  %1127 = vmatprep.subr.mxu0 0.0
  %1128 = vmatpush1.msra.mxu0 %v116
  %1129 = vmatprep.subr.mxu0 0.0
  %1130 = vmatpush1.msra.mxu0 %v117
  %1131 = vmatprep.subr.mxu0 0.0
  %1132 = vmatpush1.msra.mxu0 %v118
  %1133 = vmatprep.subr.mxu0 0.0
  %1134 = vmatpush1.msra.mxu0 0.0
  %1135 = vmatprep.subr.mxu0 0.0
  %1136 = vmatpush1.msra.mxu0 0.0
  %1137 = vmatprep.subr.mxu0 0.0
  %1138 = vmatpush1.msra.mxu0 0.0
  %1139 = vmatprep.subr.mxu0 0.0
  %1140 = vmatpush1.msra.mxu0 0.0
  %1141 = vmatprep.subr.mxu0 0.0
  %1142 = vmatpush1.msra.mxu0 0.0
  %1143 = vmatprep.subr.mxu0 0.0
  %1144 = vmatpush1.msra.mxu0 0.0
  %1145 = vmatprep.subr.mxu0 0.0
  %1146 = vmatpush1.msra.mxu0 0.0
  %1147 = vmatprep.subr.mxu0 0.0
  %1148 = vmatpush1.msra.mxu0 0.0
  %1149 = vmatprep.subr.mxu0 0.0
  %1150 = vmatpush1.msra.mxu0 0.0
  %1151 = vmatprep.subr.mxu0 0.0
  %1152 = vmatpush1.msra.mxu0 0.0
  %1153 = vmatprep.subr.mxu0 0.0
  %1154 = vmatpush1.msra.mxu0 0.0
  %1155 = vmatprep.subr.mxu0 0.0
  %1156 = vmatpush1.msra.mxu0 0.0
  %1157 = vmatprep.mubr.f32.mxu0 %v1089
  %1158 = vmatmul.mubr.f32.gmra.mrb[0].mxu0 %v1079
  %v1159 = vpop.f32.mrb[0].mxu0
  %v1160 = vadd.f32 0.0, %v1159
  %v1161 = vpop.f32.mrb[0].mxu0
  %1162 = vmatprep.mubr.f32.mxu0 %v1091
  %1163 = vmatmul.mubr.f32.gmra.mrb[0].mxu0 %v1084
  %v1164 = vpop.f32.mrb[0].mxu0
  %v1165 = vadd.f32 0.0, %v1164
  %v1166 = vpop.f32.mrb[0].mxu0
  %1167 = vdwg.mxu0
  %v1169 = vsel %vm981, %v1063, 0
  %v1171 = vsel %vm981, %v1065, 0
  %1173 = vmatprep.subr.mxu0 0.0
  %1174 = vmatpush1.msra.mxu0 %v78
  %1175 = vmatprep.subr.mxu0 0.0
  %1176 = vmatpush1.msra.mxu0 %v79
  %1177 = vmatprep.subr.mxu0 0.0
  %1178 = vmatpush1.msra.mxu0 %v80
  %1179 = vmatprep.subr.mxu0 0.0
  %1180 = vmatpush1.msra.mxu0 %v81
  %1181 = vmatprep.subr.mxu0 0.0
  %1182 = vmatpush1.msra.mxu0 %v82
  %1183 = vmatprep.subr.mxu0 0.0
  %1184 = vmatpush1.msra.mxu0 %v83
  %1185 = vmatprep.subr.mxu0 0.0
  %1186 = vmatpush1.msra.mxu0 %v84
  %1187 = vmatprep.subr.mxu0 0.0
  %1188 = vmatpush1.msra.mxu0 %v85
  %1189 = vmatprep.subr.mxu0 0.0
  %1190 = vmatpush1.msra.mxu0 %v86
  %1191 = vmatprep.subr.mxu0 0.0
  %1192 = vmatpush1.msra.mxu0 %v87
  %1193 = vmatprep.subr.mxu0 0.0
  %1194 = vmatpush1.msra.mxu0 %v88
  %1195 = vmatprep.subr.mxu0 0.0
  %1196 = vmatpush1.msra.mxu0 %v89
  %1197 = vmatprep.subr.mxu0 0.0
  %1198 = vmatpush1.msra.mxu0 %v90
  %1199 = vmatprep.subr.mxu0 0.0
  %1200 = vmatpush1.msra.mxu0 %v91
  %1201 = vmatprep.subr.mxu0 0.0
  %1202 = vmatpush1.msra.mxu0 %v92
  %1203 = vmatprep.subr.mxu0 0.0
  %1204 = vmatpush1.msra.mxu0 %v93
  %1205 = vmatprep.subr.mxu0 0.0
  %1206 = vmatpush1.msra.mxu0 %v94
  %1207 = vmatprep.subr.mxu0 0.0
  %1208 = vmatpush1.msra.mxu0 %v95
  %1209 = vmatprep.subr.mxu0 0.0
  %1210 = vmatpush1.msra.mxu0 %v96
  %1211 = vmatprep.subr.mxu0 0.0
  %1212 = vmatpush1.msra.mxu0 %v97
  %1213 = vmatprep.subr.mxu0 0.0
  %1214 = vmatpush1.msra.mxu0 0.0
  %1215 = vmatprep.subr.mxu0 0.0
  %1216 = vmatpush1.msra.mxu0 0.0
  %1217 = vmatprep.subr.mxu0 0.0
  %1218 = vmatpush1.msra.mxu0 0.0
  %1219 = vmatprep.subr.mxu0 0.0
  %1220 = vmatpush1.msra.mxu0 0.0
  %1221 = vmatprep.subr.mxu0 0.0
  %1222 = vmatpush1.msra.mxu0 0.0
  %1223 = vmatprep.subr.mxu0 0.0
  %1224 = vmatpush1.msra.mxu0 0.0
  %1225 = vmatprep.subr.mxu0 0.0
  %1226 = vmatpush1.msra.mxu0 0.0
  %1227 = vmatprep.subr.mxu0 0.0
  %1228 = vmatpush1.msra.mxu0 0.0
  %1229 = vmatprep.subr.mxu0 0.0
  %1230 = vmatpush1.msra.mxu0 0.0
  %1231 = vmatprep.subr.mxu0 0.0
  %1232 = vmatpush1.msra.mxu0 0.0
  %1233 = vmatprep.subr.mxu0 0.0
  %1234 = vmatpush1.msra.mxu0 0.0
  %1235 = vmatprep.subr.mxu0 0.0
  %1236 = vmatpush1.msra.mxu0 0.0
  %1237 = vmatprep.mubr.f32.mxu0 %v1169
  %1238 = vmatmul.mubr.f32.gmra.mrb[0].mxu0 %v1062
  %v1239 = vpop.f32.mrb[0].mxu0
  %v1240 = vadd.f32 %v1160, %v1239
  %v1241 = vpop.f32.mrb[0].mxu0
  %1242 = vmatprep.mubr.f32.mxu0 %v1171
  %1243 = vmatmul.mubr.f32.gmra.mrb[0].mxu0 %v1064
  %v1244 = vpop.f32.mrb[0].mxu0
  %v1245 = vadd.f32 %v1165, %v1244
  %v1246 = vpop.f32.mrb[0].mxu0
  %1247 = vdwg.mxu0
  %v1248 = vld [vmem:[#allocation2] sm:$0xf0]
  %v1249 = vld [vmem:[#allocation2 + $0x8] sm:$0xf0]
  %v1250 = vld [vmem:[#allocation2 + $0x20] sm:$0xf]
  %v1251 = vld [vmem:[#allocation2 + $0x28] sm:$0xf]
  %vm1256 = vcmask 1043456
  %v1257 = vrot.slane %v1248, 4
  %v1258 = vrot.slane %v1064, 4
  %v1259 = vsel %vm1256, %v1257, %v1258
  %v1260 = vrot.slane %v1249, 4
  %v1261 = vrot.slane %v1065, 4
  %v1262 = vsel %vm1256, %v1260, %v1261
  %v1263 = vrot.slane %v1250, 4
  %v1264 = vsel %vm1256, %v1258, %v1263
  %v1265 = vrot.slane %v1251, 4
  %v1266 = vsel %vm1256, %v1261, %v1265
  %v1269 = vsel %vm981, %v1262, 0
  %v1271 = vsel %vm981, %v1266, 0
  %1273 = vmatprep.subr.mxu0 0.0
  %1274 = vmatpush1.msra.mxu0 %v120
  %1275 = vmatprep.subr.mxu0 0.0
  %1276 = vmatpush1.msra.mxu0 %v121
  %1277 = vmatprep.subr.mxu0 0.0
  %1278 = vmatpush1.msra.mxu0 %v122
  %1279 = vmatprep.subr.mxu0 0.0
  %1280 = vmatpush1.msra.mxu0 %v123
  %1281 = vmatprep.subr.mxu0 0.0
  %1282 = vmatpush1.msra.mxu0 %v124
  %1283 = vmatprep.subr.mxu0 0.0
  %1284 = vmatpush1.msra.mxu0 %v125
  %1285 = vmatprep.subr.mxu0 0.0
  %1286 = vmatpush1.msra.mxu0 %v126
  %1287 = vmatprep.subr.mxu0 0.0
  %1288 = vmatpush1.msra.mxu0 %v127
  %1289 = vmatprep.subr.mxu0 0.0
  %1290 = vmatpush1.msra.mxu0 %v128
  %1291 = vmatprep.subr.mxu0 0.0
  %1292 = vmatpush1.msra.mxu0 %v129
  %1293 = vmatprep.subr.mxu0 0.0
  %1294 = vmatpush1.msra.mxu0 %v130
  %1295 = vmatprep.subr.mxu0 0.0
  %1296 = vmatpush1.msra.mxu0 %v131
  %1297 = vmatprep.subr.mxu0 0.0
  %1298 = vmatpush1.msra.mxu0 %v132
  %1299 = vmatprep.subr.mxu0 0.0
  %1300 = vmatpush1.msra.mxu0 %v133
  %1301 = vmatprep.subr.mxu0 0.0
  %1302 = vmatpush1.msra.mxu0 %v134
  %1303 = vmatprep.subr.mxu0 0.0
  %1304 = vmatpush1.msra.mxu0 %v135
  %1305 = vmatprep.subr.mxu0 0.0
  %1306 = vmatpush1.msra.mxu0 %v136
  %1307 = vmatprep.subr.mxu0 0.0
  %1308 = vmatpush1.msra.mxu0 %v137
  %1309 = vmatprep.subr.mxu0 0.0
  %1310 = vmatpush1.msra.mxu0 %v138
  %1311 = vmatprep.subr.mxu0 0.0
  %1312 = vmatpush1.msra.mxu0 %v139
  %1313 = vmatprep.subr.mxu0 0.0
  %1314 = vmatpush1.msra.mxu0 0.0
  %1315 = vmatprep.subr.mxu0 0.0
  %1316 = vmatpush1.msra.mxu0 0.0
  %1317 = vmatprep.subr.mxu0 0.0
  %1318 = vmatpush1.msra.mxu0 0.0
  %1319 = vmatprep.subr.mxu0 0.0
  %1320 = vmatpush1.msra.mxu0 0.0
  %1321 = vmatprep.subr.mxu0 0.0
  %1322 = vmatpush1.msra.mxu0 0.0
  %1323 = vmatprep.subr.mxu0 0.0
  %1324 = vmatpush1.msra.mxu0 0.0
  %1325 = vmatprep.subr.mxu0 0.0
  %1326 = vmatpush1.msra.mxu0 0.0
  %1327 = vmatprep.subr.mxu0 0.0
  %1328 = vmatpush1.msra.mxu0 0.0
  %1329 = vmatprep.subr.mxu0 0.0
  %1330 = vmatpush1.msra.mxu0 0.0
  %1331 = vmatprep.subr.mxu0 0.0
  %1332 = vmatpush1.msra.mxu0 0.0
  %1333 = vmatprep.subr.mxu0 0.0
  %1334 = vmatpush1.msra.mxu0 0.0
  %1335 = vmatprep.subr.mxu0 0.0
  %1336 = vmatpush1.msra.mxu0 0.0
  %1337 = vmatprep.mubr.f32.mxu0 %v1269
  %1338 = vmatmul.mubr.f32.gmra.mrb[0].mxu0 %v1259
  %v1339 = vpop.f32.mrb[0].mxu0
  %v1340 = vadd.f32 0.0, %v1339
  %v1341 = vpop.f32.mrb[0].mxu0
  %1342 = vmatprep.mubr.f32.mxu0 %v1271
  %1343 = vmatmul.mubr.f32.gmra.mrb[0].mxu0 %v1264
  %v1344 = vpop.f32.mrb[0].mxu0
  %v1345 = vadd.f32 0.0, %v1344
  %v1346 = vpop.f32.mrb[0].mxu0
  %1347 = vdwg.mxu0
  %v1348 = vadd.f32 %v1240, %v1340
  %v1349 = vadd.f32 %v1245, %v1345
  %v1350 = vadd.f32 %v1348, %v1349
  %v1351 = vrot.slane %v1350, 4
  %v1352 = vadd.f32 %v1350, %v1351
  %v1353 = vrot.slane %v1352, 2
  %v1354 = vadd.f32 %v1352, %v1353
  %v1355 = vrot.slane %v1354, 1
  %v1356 = vadd.f32 %v1354, %v1355
  %v1357 = vadd.f32 %v1356, 0.0
  %v1358 = vmul.f32 %v1348, %v1348
  %v1359 = vmul.f32 %v1349, %v1349
  %v1360 = vadd.f32 %v1358, %v1359
  %v1361 = vrot.slane %v1360, 4
  %v1362 = vadd.f32 %v1360, %v1361
  %v1363 = vrot.slane %v1362, 2
  %v1364 = vadd.f32 %v1362, %v1363
  %v1365 = vrot.slane %v1364, 1
  %v1366 = vadd.f32 %v1364, %v1365
  %v1367 = vadd.f32 %v1366, 0.0
  %v1368 = vld [vmem:[%s1055] sm:$0xff]
  %v1369 = vld [vmem:[%s1055 + $0x8] sm:$0xff]
  %v1370 = vld [vmem:[%s1055 + $0x10] sm:$0xff]
  %v1371 = vld [vmem:[%s1055 + $0x18] sm:$0xff]
  %v1372 = vld [vmem:[%s1055] sm:$0xfc]
  %v1373 = vld [vmem:[%s1055 + $0x8] sm:$0xfc]
  %v1374 = vld [vmem:[%s1055 + $0x20] sm:$0x3]
  %v1375 = vld [vmem:[%s1055 + $0x28] sm:$0x3]
  %v1382 = vrot.slane %v1372, 2
  %v1383 = vrot.slane %v1370, 2
  %v1384 = vsel %vm1076, %v1382, %v1383
  %v1385 = vrot.slane %v1373, 2
  %v1386 = vrot.slane %v1371, 2
  %v1387 = vsel %vm1076, %v1385, %v1386
  %v1388 = vrot.slane %v1374, 2
  %v1389 = vsel %vm1076, %v1383, %v1388
  %v1390 = vrot.slane %v1375, 2
  %v1391 = vsel %vm1076, %v1386, %v1390
  %v1394 = vsel %vm981, %v1387, 0
  %v1396 = vsel %vm981, %v1391, 0
  %1398 = vmatprep.subr.mxu0 0.0
  %1399 = vmatpush1.msra.mxu0 %v99
  %1400 = vmatprep.subr.mxu0 0.0
  %1401 = vmatpush1.msra.mxu0 %v100
  %1402 = vmatprep.subr.mxu0 0.0
  %1403 = vmatpush1.msra.mxu0 %v101
  %1404 = vmatprep.subr.mxu0 0.0
  %1405 = vmatpush1.msra.mxu0 %v102
  %1406 = vmatprep.subr.mxu0 0.0
  %1407 = vmatpush1.msra.mxu0 %v103
  %1408 = vmatprep.subr.mxu0 0.0
  %1409 = vmatpush1.msra.mxu0 %v104
  %1410 = vmatprep.subr.mxu0 0.0
  %1411 = vmatpush1.msra.mxu0 %v105
  %1412 = vmatprep.subr.mxu0 0.0
  %1413 = vmatpush1.msra.mxu0 %v106
  %1414 = vmatprep.subr.mxu0 0.0
  %1415 = vmatpush1.msra.mxu0 %v107
  %1416 = vmatprep.subr.mxu0 0.0
  %1417 = vmatpush1.msra.mxu0 %v108
  %1418 = vmatprep.subr.mxu0 0.0
  %1419 = vmatpush1.msra.mxu0 %v109
  %1420 = vmatprep.subr.mxu0 0.0
  %1421 = vmatpush1.msra.mxu0 %v110
  %1422 = vmatprep.subr.mxu0 0.0
  %1423 = vmatpush1.msra.mxu0 %v111
  %1424 = vmatprep.subr.mxu0 0.0
  %1425 = vmatpush1.msra.mxu0 %v112
  %1426 = vmatprep.subr.mxu0 0.0
  %1427 = vmatpush1.msra.mxu0 %v113
  %1428 = vmatprep.subr.mxu0 0.0
  %1429 = vmatpush1.msra.mxu0 %v114
  %1430 = vmatprep.subr.mxu0 0.0
  %1431 = vmatpush1.msra.mxu0 %v115
  %1432 = vmatprep.subr.mxu0 0.0
  %1433 = vmatpush1.msra.mxu0 %v116
  %1434 = vmatprep.subr.mxu0 0.0
  %1435 = vmatpush1.msra.mxu0 %v117
  %1436 = vmatprep.subr.mxu0 0.0
  %1437 = vmatpush1.msra.mxu0 %v118
  %1438 = vmatprep.subr.mxu0 0.0
  %1439 = vmatpush1.msra.mxu0 0.0
  %1440 = vmatprep.subr.mxu0 0.0
  %1441 = vmatpush1.msra.mxu0 0.0
  %1442 = vmatprep.subr.mxu0 0.0
  %1443 = vmatpush1.msra.mxu0 0.0
  %1444 = vmatprep.subr.mxu0 0.0
  %1445 = vmatpush1.msra.mxu0 0.0
  %1446 = vmatprep.subr.mxu0 0.0
  %1447 = vmatpush1.msra.mxu0 0.0
  %1448 = vmatprep.subr.mxu0 0.0
  %1449 = vmatpush1.msra.mxu0 0.0
  %1450 = vmatprep.subr.mxu0 0.0
  %1451 = vmatpush1.msra.mxu0 0.0
  %1452 = vmatprep.subr.mxu0 0.0
  %1453 = vmatpush1.msra.mxu0 0.0
  %1454 = vmatprep.subr.mxu0 0.0
  %1455 = vmatpush1.msra.mxu0 0.0
  %1456 = vmatprep.subr.mxu0 0.0
  %1457 = vmatpush1.msra.mxu0 0.0
  %1458 = vmatprep.subr.mxu0 0.0
  %1459 = vmatpush1.msra.mxu0 0.0
  %1460 = vmatprep.subr.mxu0 0.0
  %1461 = vmatpush1.msra.mxu0 0.0
  %1462 = vmatprep.mubr.f32.mxu0 %v1394
  %1463 = vmatmul.mubr.f32.gmra.mrb[0].mxu0 %v1384
  %v1464 = vpop.f32.mrb[0].mxu0
  %v1465 = vadd.f32 0.0, %v1464
  %v1466 = vpop.f32.mrb[0].mxu0
  %1467 = vmatprep.mubr.f32.mxu0 %v1396
  %1468 = vmatmul.mubr.f32.gmra.mrb[0].mxu0 %v1389
  %v1469 = vpop.f32.mrb[0].mxu0
  %v1470 = vadd.f32 0.0, %v1469
  %v1471 = vpop.f32.mrb[0].mxu0
  %1472 = vdwg.mxu0
  %v1474 = vsel %vm981, %v1369, 0
  %v1476 = vsel %vm981, %v1371, 0
  %1478 = vmatprep.subr.mxu0 0.0
  %1479 = vmatpush1.msra.mxu0 %v78
  %1480 = vmatprep.subr.mxu0 0.0
  %1481 = vmatpush1.msra.mxu0 %v79
  %1482 = vmatprep.subr.mxu0 0.0
  %1483 = vmatpush1.msra.mxu0 %v80
  %1484 = vmatprep.subr.mxu0 0.0
  %1485 = vmatpush1.msra.mxu0 %v81
  %1486 = vmatprep.subr.mxu0 0.0
  %1487 = vmatpush1.msra.mxu0 %v82
  %1488 = vmatprep.subr.mxu0 0.0
  %1489 = vmatpush1.msra.mxu0 %v83
  %1490 = vmatprep.subr.mxu0 0.0
  %1491 = vmatpush1.msra.mxu0 %v84
  %1492 = vmatprep.subr.mxu0 0.0
  %1493 = vmatpush1.msra.mxu0 %v85
  %1494 = vmatprep.subr.mxu0 0.0
  %1495 = vmatpush1.msra.mxu0 %v86
  %1496 = vmatprep.subr.mxu0 0.0
  %1497 = vmatpush1.msra.mxu0 %v87
  %1498 = vmatprep.subr.mxu0 0.0
  %1499 = vmatpush1.msra.mxu0 %v88
  %1500 = vmatprep.subr.mxu0 0.0
  %1501 = vmatpush1.msra.mxu0 %v89
  %1502 = vmatprep.subr.mxu0 0.0
  %1503 = vmatpush1.msra.mxu0 %v90
  %1504 = vmatprep.subr.mxu0 0.0
  %1505 = vmatpush1.msra.mxu0 %v91
  %1506 = vmatprep.subr.mxu0 0.0
  %1507 = vmatpush1.msra.mxu0 %v92
  %1508 = vmatprep.subr.mxu0 0.0
  %1509 = vmatpush1.msra.mxu0 %v93
  %1510 = vmatprep.subr.mxu0 0.0
  %1511 = vmatpush1.msra.mxu0 %v94
  %1512 = vmatprep.subr.mxu0 0.0
  %1513 = vmatpush1.msra.mxu0 %v95
  %1514 = vmatprep.subr.mxu0 0.0
  %1515 = vmatpush1.msra.mxu0 %v96
  %1516 = vmatprep.subr.mxu0 0.0
  %1517 = vmatpush1.msra.mxu0 %v97
  %1518 = vmatprep.subr.mxu0 0.0
  %1519 = vmatpush1.msra.mxu0 0.0
  %1520 = vmatprep.subr.mxu0 0.0
  %1521 = vmatpush1.msra.mxu0 0.0
  %1522 = vmatprep.subr.mxu0 0.0
  %1523 = vmatpush1.msra.mxu0 0.0
  %1524 = vmatprep.subr.mxu0 0.0
  %1525 = vmatpush1.msra.mxu0 0.0
  %1526 = vmatprep.subr.mxu0 0.0
  %1527 = vmatpush1.msra.mxu0 0.0
  %1528 = vmatprep.subr.mxu0 0.0
  %1529 = vmatpush1.msra.mxu0 0.0
  %1530 = vmatprep.subr.mxu0 0.0
  %1531 = vmatpush1.msra.mxu0 0.0
  %1532 = vmatprep.subr.mxu0 0.0
  %1533 = vmatpush1.msra.mxu0 0.0
  %1534 = vmatprep.subr.mxu0 0.0
  %1535 = vmatpush1.msra.mxu0 0.0
  %1536 = vmatprep.subr.mxu0 0.0
  %1537 = vmatpush1.msra.mxu0 0.0
  %1538 = vmatprep.subr.mxu0 0.0
  %1539 = vmatpush1.msra.mxu0 0.0
  %1540 = vmatprep.subr.mxu0 0.0
  %1541 = vmatpush1.msra.mxu0 0.0
  %1542 = vmatprep.mubr.f32.mxu0 %v1474
  %1543 = vmatmul.mubr.f32.gmra.mrb[0].mxu0 %v1368
  %v1544 = vpop.f32.mrb[0].mxu0
  %v1545 = vadd.f32 %v1465, %v1544
  %v1546 = vpop.f32.mrb[0].mxu0
  %1547 = vmatprep.mubr.f32.mxu0 %v1476
  %1548 = vmatmul.mubr.f32.gmra.mrb[0].mxu0 %v1370
  %v1549 = vpop.f32.mrb[0].mxu0
  %v1550 = vadd.f32 %v1470, %v1549
  %v1551 = vpop.f32.mrb[0].mxu0
  %1552 = vdwg.mxu0
  %v1553 = vld [vmem:[%s1055] sm:$0xf0]
  %v1554 = vld [vmem:[%s1055 + $0x8] sm:$0xf0]
  %v1555 = vld [vmem:[%s1055 + $0x20] sm:$0xf]
  %v1556 = vld [vmem:[%s1055 + $0x28] sm:$0xf]
  %v1561 = vrot.slane %v1553, 4
  %v1562 = vrot.slane %v1370, 4
  %v1563 = vsel %vm1256, %v1561, %v1562
  %v1564 = vrot.slane %v1554, 4
  %v1565 = vrot.slane %v1371, 4
  %v1566 = vsel %vm1256, %v1564, %v1565
  %v1567 = vrot.slane %v1555, 4
  %v1568 = vsel %vm1256, %v1562, %v1567
  %v1569 = vrot.slane %v1556, 4
  %v1570 = vsel %vm1256, %v1565, %v1569
  %v1573 = vsel %vm981, %v1566, 0
  %v1575 = vsel %vm981, %v1570, 0
  %1577 = vmatprep.subr.mxu0 0.0
  %1578 = vmatpush1.msra.mxu0 %v120
  %1579 = vmatprep.subr.mxu0 0.0
  %1580 = vmatpush1.msra.mxu0 %v121
  %1581 = vmatprep.subr.mxu0 0.0
  %1582 = vmatpush1.msra.mxu0 %v122
  %1583 = vmatprep.subr.mxu0 0.0
  %1584 = vmatpush1.msra.mxu0 %v123
  %1585 = vmatprep.subr.mxu0 0.0
  %1586 = vmatpush1.msra.mxu0 %v124
  %1587 = vmatprep.subr.mxu0 0.0
  %1588 = vmatpush1.msra.mxu0 %v125
  %1589 = vmatprep.subr.mxu0 0.0
  %1590 = vmatpush1.msra.mxu0 %v126
  %1591 = vmatprep.subr.mxu0 0.0
  %1592 = vmatpush1.msra.mxu0 %v127
  %1593 = vmatprep.subr.mxu0 0.0
  %1594 = vmatpush1.msra.mxu0 %v128
  %1595 = vmatprep.subr.mxu0 0.0
  %1596 = vmatpush1.msra.mxu0 %v129
  %1597 = vmatprep.subr.mxu0 0.0
  %1598 = vmatpush1.msra.mxu0 %v130
  %1599 = vmatprep.subr.mxu0 0.0
  %1600 = vmatpush1.msra.mxu0 %v131
  %1601 = vmatprep.subr.mxu0 0.0
  %1602 = vmatpush1.msra.mxu0 %v132
  %1603 = vmatprep.subr.mxu0 0.0
  %1604 = vmatpush1.msra.mxu0 %v133
  %1605 = vmatprep.subr.mxu0 0.0
  %1606 = vmatpush1.msra.mxu0 %v134
  %1607 = vmatprep.subr.mxu0 0.0
  %1608 = vmatpush1.msra.mxu0 %v135
  %1609 = vmatprep.subr.mxu0 0.0
  %1610 = vmatpush1.msra.mxu0 %v136
  %1611 = vmatprep.subr.mxu0 0.0
  %1612 = vmatpush1.msra.mxu0 %v137
  %1613 = vmatprep.subr.mxu0 0.0
  %1614 = vmatpush1.msra.mxu0 %v138
  %1615 = vmatprep.subr.mxu0 0.0
  %1616 = vmatpush1.msra.mxu0 %v139
  %1617 = vmatprep.subr.mxu0 0.0
  %1618 = vmatpush1.msra.mxu0 0.0
  %1619 = vmatprep.subr.mxu0 0.0
  %1620 = vmatpush1.msra.mxu0 0.0
  %1621 = vmatprep.subr.mxu0 0.0
  %1622 = vmatpush1.msra.mxu0 0.0
  %1623 = vmatprep.subr.mxu0 0.0
  %1624 = vmatpush1.msra.mxu0 0.0
  %1625 = vmatprep.subr.mxu0 0.0
  %1626 = vmatpush1.msra.mxu0 0.0
  %1627 = vmatprep.subr.mxu0 0.0
  %1628 = vmatpush1.msra.mxu0 0.0
  %1629 = vmatprep.subr.mxu0 0.0
  %1630 = vmatpush1.msra.mxu0 0.0
  %1631 = vmatprep.subr.mxu0 0.0
  %1632 = vmatpush1.msra.mxu0 0.0
  %1633 = vmatprep.subr.mxu0 0.0
  %1634 = vmatpush1.msra.mxu0 0.0
  %1635 = vmatprep.subr.mxu0 0.0
  %1636 = vmatpush1.msra.mxu0 0.0
  %1637 = vmatprep.subr.mxu0 0.0
  %1638 = vmatpush1.msra.mxu0 0.0
  %1639 = vmatprep.subr.mxu0 0.0
  %1640 = vmatpush1.msra.mxu0 0.0
  %1641 = vmatprep.mubr.f32.mxu0 %v1573
  %1642 = vmatmul.mubr.f32.gmra.mrb[0].mxu0 %v1563
  %v1643 = vpop.f32.mrb[0].mxu0
  %v1644 = vadd.f32 0.0, %v1643
  %v1645 = vpop.f32.mrb[0].mxu0
  %1646 = vmatprep.mubr.f32.mxu0 %v1575
  %1647 = vmatmul.mubr.f32.gmra.mrb[0].mxu0 %v1568
  %v1648 = vpop.f32.mrb[0].mxu0
  %v1649 = vadd.f32 0.0, %v1648
  %v1650 = vpop.f32.mrb[0].mxu0
  %1651 = vdwg.mxu0
  %v1652 = vadd.f32 %v1545, %v1644
  %v1653 = vadd.f32 %v1550, %v1649
  %v1654 = vadd.f32 %v1652, %v1653
  %v1655 = vrot.slane %v1654, 4
  %v1656 = vadd.f32 %v1654, %v1655
  %v1657 = vrot.slane %v1656, 2
  %v1658 = vadd.f32 %v1656, %v1657
  %v1659 = vrot.slane %v1658, 1
  %v1660 = vadd.f32 %v1658, %v1659
  %v1661 = vadd.f32 %v1357, %v1660
  %v1662 = vmul.f32 %v1652, %v1652
  %v1663 = vmul.f32 %v1653, %v1653
  %v1664 = vadd.f32 %v1662, %v1663
  %v1665 = vrot.slane %v1664, 4
  %v1666 = vadd.f32 %v1664, %v1665
  %v1667 = vrot.slane %v1666, 2
  %v1668 = vadd.f32 %v1666, %v1667
  %v1669 = vrot.slane %v1668, 1
  %v1670 = vadd.f32 %v1668, %v1669
  %v1671 = vadd.f32 %v1367, %v1670
  %v1672 = vld [vmem:[%s7] sm:$0x1]
  %v1673 = vld [vmem:[%s8] sm:$0x1]
  %1674 = vmatprep.subr.mxu0 0.0
  %1675 = vmatpush1.msra.mxu0 %v32
  %1676 = vmatprep.subr.mxu0 0.0
  %1677 = vmatpush1.msra.mxu0 %v33
  %1678 = vmatprep.subr.mxu0 0.0
  %1679 = vmatpush1.msra.mxu0 %v34
  %1680 = vmatprep.subr.mxu0 0.0
  %1681 = vmatpush1.msra.mxu0 %v35
  %1682 = vmatprep.subr.mxu0 0.0
  %1683 = vmatpush1.msra.mxu0 %v36
  %1684 = vmatprep.subr.mxu0 0.0
  %1685 = vmatpush1.msra.mxu0 %v37
  %1686 = vmatprep.subr.mxu0 0.0
  %1687 = vmatpush1.msra.mxu0 %v38
  %1688 = vmatprep.subr.mxu0 0.0
  %1689 = vmatpush1.msra.mxu0 %v39
  %1690 = vmatprep.subr.mxu0 0.0
  %1691 = vmatpush1.msra.mxu0 %v40
  %1692 = vmatprep.subr.mxu0 0.0
  %1693 = vmatpush1.msra.mxu0 %v41
  %1694 = vmatprep.subr.mxu0 0.0
  %1695 = vmatpush1.msra.mxu0 %v42
  %1696 = vmatprep.subr.mxu0 0.0
  %1697 = vmatpush1.msra.mxu0 %v43
  %1698 = vmatprep.subr.mxu0 0.0
  %1699 = vmatpush1.msra.mxu0 %v44
  %1700 = vmatprep.subr.mxu0 0.0
  %1701 = vmatpush1.msra.mxu0 %v45
  %1702 = vmatprep.subr.mxu0 0.0
  %1703 = vmatpush1.msra.mxu0 %v46
  %1704 = vmatprep.subr.mxu0 0.0
  %1705 = vmatpush1.msra.mxu0 %v47
  %1706 = vmatprep.subr.mxu0 0.0
  %1707 = vmatpush1.msra.mxu0 0.0
  %1708 = vmatprep.subr.mxu0 0.0
  %1709 = vmatpush1.msra.mxu0 0.0
  %1710 = vmatprep.subr.mxu0 0.0
  %1711 = vmatpush1.msra.mxu0 0.0
  %1712 = vmatprep.subr.mxu0 0.0
  %1713 = vmatpush1.msra.mxu0 0.0
  %1714 = vmatprep.subr.mxu0 0.0
  %1715 = vmatpush1.msra.mxu0 0.0
  %1716 = vmatprep.subr.mxu0 0.0
  %1717 = vmatpush1.msra.mxu0 0.0
  %1718 = vmatprep.subr.mxu0 0.0
  %1719 = vmatpush1.msra.mxu0 0.0
  %1720 = vmatprep.subr.mxu0 0.0
  %1721 = vmatpush1.msra.mxu0 0.0
  %1722 = vmatprep.subr.mxu0 0.0
  %1723 = vmatpush1.msra.mxu0 0.0
  %1724 = vmatprep.subr.mxu0 0.0
  %1725 = vmatpush1.msra.mxu0 0.0
  %1726 = vmatprep.subr.mxu0 0.0
  %1727 = vmatpush1.msra.mxu0 0.0
  %1728 = vmatprep.subr.mxu0 0.0
  %1729 = vmatpush1.msra.mxu0 0.0
  %1730 = vmatprep.subr.mxu0 0.0
  %1731 = vmatpush1.msra.mxu0 0.0
  %1732 = vmatprep.subr.mxu0 0.0
  %1733 = vmatpush1.msra.mxu0 0.0
  %1734 = vmatprep.subr.mxu0 0.0
  %1735 = vmatpush1.msra.mxu0 0.0
  %1736 = vmatprep.subr.mxu0 0.0
  %1737 = vmatpush1.msra.mxu0 0.0
  %1738 = vmatprep.mubr.f32.mxu0 0.0
  %1739 = vmatmul.mubr.f32.gmra.mrb[0].mxu0 %v1661
  %v1740 = vpop.f32.mrb[0].mxu0
  %v1741 = vadd.f32 0.0, %v1740
  %v1742 = vpop.f32.mrb[0].mxu0
  %1743 = vdwg.mxu0
  %v1744 = vmul.f32 %v1741, %v752
  %1745 = vmatprep.subr.mxu0 0.0
  %1746 = vmatpush1.msra.mxu0 %v32
  %1747 = vmatprep.subr.mxu0 0.0
  %1748 = vmatpush1.msra.mxu0 %v33
  %1749 = vmatprep.subr.mxu0 0.0
  %1750 = vmatpush1.msra.mxu0 %v34
  %1751 = vmatprep.subr.mxu0 0.0
  %1752 = vmatpush1.msra.mxu0 %v35
  %1753 = vmatprep.subr.mxu0 0.0
  %1754 = vmatpush1.msra.mxu0 %v36
  %1755 = vmatprep.subr.mxu0 0.0
  %1756 = vmatpush1.msra.mxu0 %v37
  %1757 = vmatprep.subr.mxu0 0.0
  %1758 = vmatpush1.msra.mxu0 %v38
  %1759 = vmatprep.subr.mxu0 0.0
  %1760 = vmatpush1.msra.mxu0 %v39
  %1761 = vmatprep.subr.mxu0 0.0
  %1762 = vmatpush1.msra.mxu0 %v40
  %1763 = vmatprep.subr.mxu0 0.0
  %1764 = vmatpush1.msra.mxu0 %v41
  %1765 = vmatprep.subr.mxu0 0.0
  %1766 = vmatpush1.msra.mxu0 %v42
  %1767 = vmatprep.subr.mxu0 0.0
  %1768 = vmatpush1.msra.mxu0 %v43
  %1769 = vmatprep.subr.mxu0 0.0
  %1770 = vmatpush1.msra.mxu0 %v44
  %1771 = vmatprep.subr.mxu0 0.0
  %1772 = vmatpush1.msra.mxu0 %v45
  %1773 = vmatprep.subr.mxu0 0.0
  %1774 = vmatpush1.msra.mxu0 %v46
  %1775 = vmatprep.subr.mxu0 0.0
  %1776 = vmatpush1.msra.mxu0 %v47
  %1777 = vmatprep.subr.mxu0 0.0
  %1778 = vmatpush1.msra.mxu0 0.0
  %1779 = vmatprep.subr.mxu0 0.0
  %1780 = vmatpush1.msra.mxu0 0.0
  %1781 = vmatprep.subr.mxu0 0.0
  %1782 = vmatpush1.msra.mxu0 0.0
  %1783 = vmatprep.subr.mxu0 0.0
  %1784 = vmatpush1.msra.mxu0 0.0
  %1785 = vmatprep.subr.mxu0 0.0
  %1786 = vmatpush1.msra.mxu0 0.0
  %1787 = vmatprep.subr.mxu0 0.0
  %1788 = vmatpush1.msra.mxu0 0.0
  %1789 = vmatprep.subr.mxu0 0.0
  %1790 = vmatpush1.msra.mxu0 0.0
  %1791 = vmatprep.subr.mxu0 0.0
  %1792 = vmatpush1.msra.mxu0 0.0
  %1793 = vmatprep.subr.mxu0 0.0
  %1794 = vmatpush1.msra.mxu0 0.0
  %1795 = vmatprep.subr.mxu0 0.0
  %1796 = vmatpush1.msra.mxu0 0.0
  %1797 = vmatprep.subr.mxu0 0.0
  %1798 = vmatpush1.msra.mxu0 0.0
  %1799 = vmatprep.subr.mxu0 0.0
  %1800 = vmatpush1.msra.mxu0 0.0
  %1801 = vmatprep.subr.mxu0 0.0
  %1802 = vmatpush1.msra.mxu0 0.0
  %1803 = vmatprep.subr.mxu0 0.0
  %1804 = vmatpush1.msra.mxu0 0.0
  %1805 = vmatprep.subr.mxu0 0.0
  %1806 = vmatpush1.msra.mxu0 0.0
  %1807 = vmatprep.subr.mxu0 0.0
  %1808 = vmatpush1.msra.mxu0 0.0
  %1809 = vmatprep.mubr.f32.mxu0 0.0
  %1810 = vmatmul.mubr.f32.gmra.mrb[0].mxu0 %v1671
  %v1811 = vpop.f32.mrb[0].mxu0
  %v1812 = vadd.f32 0.0, %v1811
  %v1813 = vpop.f32.mrb[0].mxu0
  %1814 = vdwg.mxu0
  %v1815 = vmul.f32 %v1812, %v752
  %v1816 = vmul.f32 %v1744, %v1744
  %v1817 = vsub.f32 %v1815, %v1816
  %v1818 = vmax.f32 %v1817, 0.0
  %v1819 = vadd.f32 %v1818, 1e-05
  %v1820 = vrsqrt.pop %v1819
  %v1821 = vmul.f32 %v1672, %v1820
  %v1822 = vmul.f32 %v1744, %v1821
  %v1823 = vsub.f32 %v1673, %v1822
  %v1825 = vsel %vm833, %v1821, 0
  %1827 = vmatprep.subr.mxu0 0.0
  %1828 = vmatpush1.msra.mxu0 %v48
  %1829 = vmatprep.subr.mxu0 0.0
  %1830 = vmatpush1.msra.mxu0 0.0
  %1831 = vmatprep.subr.mxu0 0.0
  %1832 = vmatpush1.msra.mxu0 0.0
  %1833 = vmatprep.subr.mxu0 0.0
  %1834 = vmatpush1.msra.mxu0 0.0
  %1835 = vmatprep.subr.mxu0 0.0
  %1836 = vmatpush1.msra.mxu0 0.0
  %1837 = vmatprep.subr.mxu0 0.0
  %1838 = vmatpush1.msra.mxu0 0.0
  %1839 = vmatprep.subr.mxu0 0.0
  %1840 = vmatpush1.msra.mxu0 0.0
  %1841 = vmatprep.subr.mxu0 0.0
  %1842 = vmatpush1.msra.mxu0 0.0
  %1843 = vmatprep.subr.mxu0 0.0
  %1844 = vmatpush1.msra.mxu0 0.0
  %1845 = vmatprep.subr.mxu0 0.0
  %1846 = vmatpush1.msra.mxu0 0.0
  %1847 = vmatprep.subr.mxu0 0.0
  %1848 = vmatpush1.msra.mxu0 0.0
  %1849 = vmatprep.subr.mxu0 0.0
  %1850 = vmatpush1.msra.mxu0 0.0
  %1851 = vmatprep.subr.mxu0 0.0
  %1852 = vmatpush1.msra.mxu0 0.0
  %1853 = vmatprep.subr.mxu0 0.0
  %1854 = vmatpush1.msra.mxu0 0.0
  %1855 = vmatprep.subr.mxu0 0.0
  %1856 = vmatpush1.msra.mxu0 0.0
  %1857 = vmatprep.subr.mxu0 0.0
  %1858 = vmatpush1.msra.mxu0 0.0
  %1859 = vmatprep.subr.mxu0 0.0
  %1860 = vmatpush1.msra.mxu0 0.0
  %1861 = vmatprep.subr.mxu0 0.0
  %1862 = vmatpush1.msra.mxu0 0.0
  %1863 = vmatprep.subr.mxu0 0.0
  %1864 = vmatpush1.msra.mxu0 0.0
  %1865 = vmatprep.subr.mxu0 0.0
  %1866 = vmatpush1.msra.mxu0 0.0
  %1867 = vmatprep.subr.mxu0 0.0
  %1868 = vmatpush1.msra.mxu0 0.0
  %1869 = vmatprep.subr.mxu0 0.0
  %1870 = vmatpush1.msra.mxu0 0.0
  %1871 = vmatprep.subr.mxu0 0.0
  %1872 = vmatpush1.msra.mxu0 0.0
  %1873 = vmatprep.subr.mxu0 0.0
  %1874 = vmatpush1.msra.mxu0 0.0
  %1875 = vmatprep.subr.mxu0 0.0
  %1876 = vmatpush1.msra.mxu0 0.0
  %1877 = vmatprep.subr.mxu0 0.0
  %1878 = vmatpush1.msra.mxu0 0.0
  %1879 = vmatprep.subr.mxu0 0.0
  %1880 = vmatpush1.msra.mxu0 0.0
  %1881 = vmatprep.subr.mxu0 0.0
  %1882 = vmatpush1.msra.mxu0 0.0
  %1883 = vmatprep.subr.mxu0 0.0
  %1884 = vmatpush1.msra.mxu0 0.0
  %1885 = vmatprep.subr.mxu0 0.0
  %1886 = vmatpush1.msra.mxu0 0.0
  %1887 = vmatprep.subr.mxu0 0.0
  %1888 = vmatpush1.msra.mxu0 0.0
  %1889 = vmatprep.subr.mxu0 0.0
  %1890 = vmatpush1.msra.mxu0 0.0
  %1891 = vmatprep.mubr.f32.mxu0 0.0
  %1892 = vmatmul.mubr.f32.gmra.mrb[0].mxu0 %v1825
  %v1893 = vpop.f32.mrb[0].mxu0
  %v1894 = vadd.f32 0.0, %v1893
  %v1895 = vpop.f32.mrb[0].mxu0
  %1896 = vdwg.mxu0
  %v1898 = vsel %vm833, %v1823, 0
  %1900 = vmatprep.subr.mxu0 0.0
  %1901 = vmatpush1.msra.mxu0 %v48
  %1902 = vmatprep.subr.mxu0 0.0
  %1903 = vmatpush1.msra.mxu0 0.0
  %1904 = vmatprep.subr.mxu0 0.0
  %1905 = vmatpush1.msra.mxu0 0.0
  %1906 = vmatprep.subr.mxu0 0.0
  %1907 = vmatpush1.msra.mxu0 0.0
  %1908 = vmatprep.subr.mxu0 0.0
  %1909 = vmatpush1.msra.mxu0 0.0
  %1910 = vmatprep.subr.mxu0 0.0
  %1911 = vmatpush1.msra.mxu0 0.0
  %1912 = vmatprep.subr.mxu0 0.0
  %1913 = vmatpush1.msra.mxu0 0.0
  %1914 = vmatprep.subr.mxu0 0.0
  %1915 = vmatpush1.msra.mxu0 0.0
  %1916 = vmatprep.subr.mxu0 0.0
  %1917 = vmatpush1.msra.mxu0 0.0
  %1918 = vmatprep.subr.mxu0 0.0
  %1919 = vmatpush1.msra.mxu0 0.0
  %1920 = vmatprep.subr.mxu0 0.0
  %1921 = vmatpush1.msra.mxu0 0.0
  %1922 = vmatprep.subr.mxu0 0.0
  %1923 = vmatpush1.msra.mxu0 0.0
  %1924 = vmatprep.subr.mxu0 0.0
  %1925 = vmatpush1.msra.mxu0 0.0
  %1926 = vmatprep.subr.mxu0 0.0
  %1927 = vmatpush1.msra.mxu0 0.0
  %1928 = vmatprep.subr.mxu0 0.0
  %1929 = vmatpush1.msra.mxu0 0.0
  %1930 = vmatprep.subr.mxu0 0.0
  %1931 = vmatpush1.msra.mxu0 0.0
  %1932 = vmatprep.subr.mxu0 0.0
  %1933 = vmatpush1.msra.mxu0 0.0
  %1934 = vmatprep.subr.mxu0 0.0
  %1935 = vmatpush1.msra.mxu0 0.0
  %1936 = vmatprep.subr.mxu0 0.0
  %1937 = vmatpush1.msra.mxu0 0.0
  %1938 = vmatprep.subr.mxu0 0.0
  %1939 = vmatpush1.msra.mxu0 0.0
  %1940 = vmatprep.subr.mxu0 0.0
  %1941 = vmatpush1.msra.mxu0 0.0
  %1942 = vmatprep.subr.mxu0 0.0
  %1943 = vmatpush1.msra.mxu0 0.0
  %1944 = vmatprep.subr.mxu0 0.0
  %1945 = vmatpush1.msra.mxu0 0.0
  %1946 = vmatprep.subr.mxu0 0.0
  %1947 = vmatpush1.msra.mxu0 0.0
  %1948 = vmatprep.subr.mxu0 0.0
  %1949 = vmatpush1.msra.mxu0 0.0
  %1950 = vmatprep.subr.mxu0 0.0
  %1951 = vmatpush1.msra.mxu0 0.0
  %1952 = vmatprep.subr.mxu0 0.0
  %1953 = vmatpush1.msra.mxu0 0.0
  %1954 = vmatprep.subr.mxu0 0.0
  %1955 = vmatpush1.msra.mxu0 0.0
  %1956 = vmatprep.subr.mxu0 0.0
  %1957 = vmatpush1.msra.mxu0 0.0
  %1958 = vmatprep.subr.mxu0 0.0
  %1959 = vmatpush1.msra.mxu0 0.0
  %1960 = vmatprep.subr.mxu0 0.0
  %1961 = vmatpush1.msra.mxu0 0.0
  %1962 = vmatprep.subr.mxu0 0.0
  %1963 = vmatpush1.msra.mxu0 0.0
  %1964 = vmatprep.mubr.f32.mxu0 0.0
  %1965 = vmatmul.mubr.f32.gmra.mrb[0].mxu0 %v1898
  %v1966 = vpop.f32.mrb[0].mxu0
  %v1967 = vadd.f32 0.0, %v1966
  %v1968 = vpop.f32.mrb[0].mxu0
  %1969 = vdwg.mxu0
  %v1970 = vlaneseq
  %v1971 = vshrl.u32 %v1970, 7
  %v1972 = vsub.s32 0, %v1971
  %v1973 = vrot.slane %v1894, %v1972
  %v1974 = vmul.f32 %v1348, %v1973
  %v1975 = vmul.f32 %v1349, %v1973
  %v1976 = vlaneseq
  %v1977 = vshrl.u32 %v1976, 7
  %v1978 = vsub.s32 0, %v1977
  %v1979 = vrot.slane %v1967, %v1978
  %v1980 = vadd.f32 %v1974, %v1979
  %v1981 = vadd.f32 %v1975, %v1979
  %v1982 = vadd.f32 %v1980, %v1004
  %v1983 = vadd.f32 %v1981, %v1005
  %v1984 = vmax.f32 %v1982, 0.0
  %v1985 = vmax.f32 %v1983, 0.0
  %1986 = vst [vmem:[%s9] sm:$0xff] %v1984
  %1987 = vst [vmem:[%s9 + $0x8] sm:$0xff] %v1985
  %v1988 = vmul.f32 %v1652, %v1973
  %v1989 = vmul.f32 %v1653, %v1973
  %v1990 = vadd.f32 %v1988, %v1979
  %v1991 = vadd.f32 %v1989, %v1979
  %v1992 = vadd.f32 %v1990, %v1037
  %v1993 = vadd.f32 %v1991, %v1038
  %v1994 = vmax.f32 %v1992, 0.0
  %v1995 = vmax.f32 %v1993, 0.0
  %s1996 = scalar_lea.vmem %s9, 16
  %1997 = vst [vmem:[%s1996] sm:$0xff] %v1994
  %1998 = vst [vmem:[%s1996 + $0x8] sm:$0xff] %v1995
  // Predicated region
  $region38: #{resnet_block_forward.1} parent=0 // pred_check
    _
  $region39: #{resnet_block_forward.1} parent=0 // pred_check_branch
    %2000 = sbr.rel (0) target = $region41
  $region40: #{resnet_block_forward.1} parent=0 // pred_region
    _
  $region41: #{resnet_block_forward.1} parent=0 // pred_fallthru
    _
  // Predicated region
  $region42: #{resnet_block_forward.1} parent=0 // pred_check
    _
  $region43: #{resnet_block_forward.1} parent=0 // pred_check_branch
    %2002 = sbr.rel (0) target = $region45
  $region44: #{resnet_block_forward.1} parent=0 // pred_region
    _
  $region45: #{resnet_block_forward.1} parent=0 // pred_fallthru
    _

</llo_original>
